<compile_context>
chip_gen: v5e
topology: v5e:2x2
jax: 0.10.0
libtpu: 0.0.40
codegen_flags: <defaults>
</compile_context>

<pallas_src>
import functools

import jax
import jax.numpy as jnp
from jax.experimental import pallas as pl
from jax.experimental.pallas import tpu as pltpu

NEG_SLOPE = 0.01     # F.leaky_relu default negative_slope
BN_EPS = 1e-5        # nn.BatchNorm2d default eps


# ---------------------------------------------------------------------------
# Pallas kernels
# ---------------------------------------------------------------------------

def _matmul_bn_kernel(x_ref, w_ref, s_ref, b_ref, o_ref, *, apply_act):
    # X (TM, K) [bf16] @ W (K, TN) [bf16] -> f32 acc, folded-BN scale/bias (+ leaky_relu),
    # store in o_ref.dtype (bf16 feature maps).
    acc = jnp.dot(x_ref[...], w_ref[...], preferred_element_type=jnp.float32)
    z = acc * s_ref[...] + b_ref[...]
    if apply_act:
        z = jnp.maximum(z, NEG_SLOPE * z)          # leaky_relu
    o_ref[...] = z.astype(o_ref.dtype)


def _matmul_bn_res_kernel(x_ref, w_ref, s_ref, b_ref, r_ref, o_ref, *, apply_act):
    # Same as above, plus a fused residual add (bf16 residual, f32 add) before activation.
    acc = jnp.dot(x_ref[...], w_ref[...], preferred_element_type=jnp.float32)
    z = acc * s_ref[...] + b_ref[...] + r_ref[...].astype(jnp.float32)
    if apply_act:
        z = jnp.maximum(z, NEG_SLOPE * z)
    o_ref[...] = z.astype(o_ref.dtype)


def _pool_linear_kernel(x_ref, w_ref, b_ref, o_ref):
    # x_ref: (N, HW, C) bf16 final feature map; w_ref: (num_classes, C) bf16;
    # b_ref: (1, num_classes) f32.  avg_pool2d(4) on the 4x4 final stage == spatial mean,
    # fused with the linear head.  Whole batch at once (no per-sample loop).
    x = x_ref[...].astype(jnp.float32)
    pooled = jnp.mean(x, axis=1)                                     # (N, C) f32
    logits = jax.lax.dot_general(
        pooled.astype(w_ref.dtype), w_ref[...],
        dimension_numbers=(((1,), (1,)), ((), ())),                  # contract shared last dim
        preferred_element_type=jnp.float32)
    o_ref[...] = logits + b_ref[...]


def _pool_kernel(x_ref, o_ref):
    # features=True branch: return the pooled/flattened features.
    o_ref[...] = jnp.mean(x_ref[...].astype(jnp.float32), axis=1)


# ---------------------------------------------------------------------------
# Fused conv-as-matmul wrapper (2-D grid, resident weight blocks along M)
# ---------------------------------------------------------------------------

def _fused_matmul(x, w, scale, bias, residual=None, apply_act=True,
                  use_pallas=True, block_m=512):
    M, K = x.shape
    Kw, N = w.shape
    assert K == Kw
    out_dtype = w.dtype                      # bf16 in the real path, f32 in the f32 check path

    if not use_pallas:   # matched-math XLA reference path (for verification only)
        z = jnp.dot(x, w, preferred_element_type=jnp.float32) * scale + bias
        if residual is not None:
            z = z + residual
        if apply_act:
            z = jnp.maximum(z, NEG_SLOPE * z)
        return z.astype(out_dtype)

    # --- tile sizes -----------------------------------------------------------------
    TM = M if M <= block_m else block_m
    TN = N if N <= 256 else 256
    # If the whole problem fits one step, split the channel axis so v7x megacore has work.
    if pl.cdiv(M, TM) * pl.cdiv(N, TN) == 1 and N >= 256:
        TN = N // 2
    grid = (pl.cdiv(M, TM), pl.cdiv(N, TN))

    in_specs = [
        pl.BlockSpec((TM, K), lambda i, j: (i, 0)),     # patch rows tile (bf16)
        pl.BlockSpec((K, TN), lambda i, j: (0, j)),     # weight: resident along M axis
        pl.BlockSpec((1, TN), lambda i, j: (0, j)),     # folded BN scale (f32)
        pl.BlockSpec((1, TN), lambda i, j: (0, j)),     # folded BN bias  (f32)
    ]
    args = [x, w, scale, bias]
    res_bytes = 0
    if residual is None:
        kernel = functools.partial(_matmul_bn_kernel, apply_act=apply_act)
    else:
        kernel = functools.partial(_matmul_bn_res_kernel, apply_act=apply_act)
        in_specs.append(pl.BlockSpec((TM, TN), lambda i, j: (i, j)))
        args.append(residual)
        res_bytes = M * N * residual.dtype.itemsize

    # VMEM budget: size the scoped limit from the actual (double-buffered) tile footprint.
    # v5e's default scoped VMEM is 16 MiB; cap at 48 MiB (safe for v7x's 64 MiB physical).
    itm = jnp.dtype(out_dtype).itemsize
    tile_bytes = 2 * (TM * K * x.dtype.itemsize + K * TN * w.dtype.itemsize
                      + 2 * TN * 4 + TM * TN * itm
                      + (TM * TN * residual.dtype.itemsize if residual is not None else 0))
    vmem_limit = None
    if tile_bytes > (14 << 20):
        vmem_limit = min(tile_bytes + (4 << 20), 48 << 20)

    cost = pl.CostEstimate(
        flops=2 * M * K * N,
        transcendentals=0,
        bytes_accessed=(M * K * x.dtype.itemsize + K * N * w.dtype.itemsize
                        + M * N * itm + 2 * N * 4 + res_bytes))

    return pl.pallas_call(
        kernel,
        out_shape=jax.ShapeDtypeStruct((M, N), out_dtype),
        grid=grid,
        in_specs=in_specs,
        out_specs=pl.BlockSpec((TM, TN), lambda i, j: (i, j)),
        compiler_params=pltpu.CompilerParams(
            dimension_semantics=("parallel", "parallel"),
            vmem_limit_bytes=vmem_limit),
        cost_estimate=cost,
    )(*args)


# ---------------------------------------------------------------------------
# ResNet forward (NHWC bf16 feature maps between kernels)
# ---------------------------------------------------------------------------

def _im2col_3x3(x, stride):
    """3x3 / pad-1 patch extraction (XLA data movement only). (N,H,W,C) -> (N*Ho*Wo, 9C)."""
    N, H, W, C = x.shape
    Ho = (H + 2 - 3) // stride + 1
    Wo = (W + 2 - 3) // stride + 1
    xp = jnp.pad(x, ((0, 0), (1, 1), (1, 1), (0, 0)))
    cols = []
    for dy in range(3):
        for dx in range(3):
            cols.append(xp[:, dy:dy + stride * (Ho - 1) + 1:stride,
                              dx:dx + stride * (Wo - 1) + 1:stride, :])
    patches = jnp.concatenate(cols, axis=-1)          # K ordering = (ky, kx, cin)
    return patches.reshape(N * Ho * Wo, 9 * C), (N, Ho, Wo)


def _block_m_for(k):
    # Early layers (small K, tiny weights) can afford longer M runs; deep layers keep 512.
    return 1024 if k <= 1152 else 512


def _conv3x3_bn(x, w_mat, scale, bias, stride, apply_act, use_pallas, residual=None):
    # Cast to the matmul dtype BEFORE im2col so the 9xC patch matrix is built in bf16.
    patches, (N, Ho, Wo) = _im2col_3x3(x.astype(w_mat.dtype), stride)
    y = _fused_matmul(patches, w_mat, scale, bias,
                      residual=residual, apply_act=apply_act, use_pallas=use_pallas,
                      block_m=_block_m_for(patches.shape[1]))
    return y.reshape(N, Ho, Wo, w_mat.shape[1])


def _basic_block(x, blk, use_pallas):
    # Standard CIFAR BasicBlock (expansion=1) with leaky_relu is assumed here.
    N, H, W, Cin = x.shape
    stride = blk["stride"]
    out1 = _conv3x3_bn(x, blk["conv1_w"], blk["bn1_s"], blk["bn1_b"],
                       stride, True, use_pallas)
    if "sc_w" in blk:                                 # 1x1 stride-s conv + BN shortcut
        sc_in = x[:, ::stride, ::stride, :].astype(blk["sc_w"].dtype)
        Ho, Wo = sc_in.shape[1], sc_in.shape[2]
        sc = _fused_matmul(sc_in.reshape(N * Ho * Wo, Cin),
                           blk["sc_w"], blk["sc_s"], blk["sc_b"],
                           residual=None, apply_act=False, use_pallas=use_pallas,
                           block_m=_block_m_for(Cin))
    else:                                             # identity shortcut (already bf16)
        sc = x.reshape(N * H * W, Cin)
    return _conv3x3_bn(out1, blk["conv2_w"], blk["bn2_s"], blk["bn2_b"],
                       1, True, use_pallas, residual=sc)


def _head(x, fc_w, fc_b, use_pallas, features=False):
    # F.avg_pool2d(out, 4) + flatten + linear.  For the 32x32 CIFAR-style input the final
    # stage is 4x4, so the pool is a global spatial mean.
    N, H, W, C = x.shape
    assert H == 4 and W == 4, "head expects a 4x4 final feature map (32x32 input)"
    # TODO(synk): general avg_pool2d(kernel=4, stride=4) for other input sizes not implemented.
    x3 = x.reshape(N, H * W, C)
    if not use_pallas:
        pooled = jnp.mean(x3.astype(jnp.float32), axis=1)
        if features:
            return pooled
        return jax.lax.dot_general(pooled.astype(fc_w.dtype), fc_w,
                                   dimension_numbers=(((1,), (1,)), ((), ())),
                                   preferred_element_type=jnp.float32) + fc_b
    if features:
        return pl.pallas_call(
            _pool_kernel,
            out_shape=jax.ShapeDtypeStruct((N, C), jnp.float32),
            in_specs=[pl.BlockSpec(memory_space=pltpu.MemorySpace.VMEM)],
            out_specs=pl.BlockSpec(memory_space=pltpu.MemorySpace.VMEM),
        )(x3)
    return pl.pallas_call(
        _pool_linear_kernel,
        out_shape=jax.ShapeDtypeStruct((N, fc_w.shape[0]), jnp.float32),
        in_specs=[pl.BlockSpec(memory_space=pltpu.MemorySpace.VMEM)] * 3,
        out_specs=pl.BlockSpec(memory_space=pltpu.MemorySpace.VMEM),
    )(x3, fc_w, fc_b)


def resnet_forward(prep, x_nhwc, use_pallas=True, features=False):
    out = _conv3x3_bn(x_nhwc, prep["conv1_w"], prep["bn1_s"], prep["bn1_b"],
                      stride=1, apply_act=True, use_pallas=use_pallas)
    for layer in prep["layers"]:
        for blk in layer:
            out = _basic_block(out, blk, use_pallas)
    return _head(out, prep["fc_w"], prep["fc_b"], use_pallas, features=features)


# ---------------------------------------------------------------------------
# Parameter construction / preparation (BN folding, weight reshape, bf16 cast)
# ---------------------------------------------------------------------------

def init_params(key, num_blocks=(2, 2, 2, 2), num_classes=10):
    keys = list(jax.random.split(key, 256))
    it = iter(keys)
    nk = lambda: next(it)

    def conv(cout, cin, ksz):
        fan_in = cin * ksz * ksz
        return jax.random.normal(nk(), (cout, cin, ksz, ksz), jnp.float32) * (2.0 / fan_in) ** 0.5

    def bn(c):
        k1, k2, k3, k4 = jax.random.split(nk(), 4)
        return {"gamma": 1.0 + 0.1 * jax.random.normal(k1, (c,), jnp.float32),
                "beta": 0.05 * jax.random.normal(k2, (c,), jnp.float32),
                "mean": 0.05 * jax.random.normal(k3, (c,), jnp.float32),
                "var": 1.0 + 0.1 * jax.random.uniform(k4, (c,), jnp.float32)}

    params = {"conv1": conv(64, 3, 3), "bn1": bn(64)}
    in_planes, layers = 64, []
    for planes, nblk, stride0 in zip((64, 128, 256, 512), num_blocks, (1, 2, 2, 2)):
        blocks = []
        for bidx in range(nblk):
            stride = stride0 if bidx == 0 else 1
            blk = {"stride": stride,
                   "conv1": conv(planes, in_planes, 3), "bn1": bn(planes),
                   "conv2": conv(planes, planes, 3), "bn2": bn(planes)}
            if stride != 1 or in_planes != planes:
                blk["sc_conv"] = conv(planes, in_planes, 1)
                blk["sc_bn"] = bn(planes)
            blocks.append(blk)
            in_planes = planes
        layers.append(blocks)
    params["layers"] = layers
    params["fc_w"] = jax.random.normal(nk(), (num_classes, 512), jnp.float32) * (1.0 / 512) ** 0.5
    params["fc_b"] = 0.01 * jax.random.normal(nk(), (num_classes,), jnp.float32)
    return params


def _fold_bn(bn):
    scale = bn["gamma"] * jax.lax.rsqrt(bn["var"] + BN_EPS)
    bias = bn["beta"] - bn["mean"] * scale
    return scale.reshape(1, -1).astype(jnp.float32), bias.reshape(1, -1).astype(jnp.float32)


def prepare_params(params, mm_dtype=jnp.bfloat16):
    """Fold BN into per-channel scale/bias and reshape conv weights to (K, N) matmul form."""
    def prep3(w):   # (O, I, 3, 3) -> (9I, O); K order (ky, kx, cin) matches _im2col_3x3
        return jnp.transpose(w, (2, 3, 1, 0)).reshape(-1, w.shape[0]).astype(mm_dtype)

    def prep1(w):   # (O, I, 1, 1) -> (I, O)
        return jnp.transpose(w[:, :, 0, 0], (1, 0)).astype(mm_dtype)

    prep = {"conv1_w": prep3(params["conv1"])}
    prep["bn1_s"], prep["bn1_b"] = _fold_bn(params["bn1"])
    layers = []
    for layer in params["layers"]:
        blks = []
        for blk in layer:
            p = {"stride": blk["stride"],
                 "conv1_w": prep3(blk["conv1"]), "conv2_w": prep3(blk["conv2"])}
            p["bn1_s"], p["bn1_b"] = _fold_bn(blk["bn1"])
            p["bn2_s"], p["bn2_b"] = _fold_bn(blk["bn2"])
            if "sc_conv" in blk:
                p["sc_w"] = prep1(blk["sc_conv"])
                p["sc_s"], p["sc_b"] = _fold_bn(blk["sc_bn"])
            blks.append(p)
        layers.append(blks)
    prep["layers"] = layers
    prep["fc_w"] = params["fc_w"].astype(mm_dtype)                    # (num_classes, 512)
    prep["fc_b"] = params["fc_b"].reshape(1, -1).astype(jnp.float32)
    return prep


# ---------------------------------------------------------------------------
# Independent f32 reference (lax.conv, no im2col, no Pallas, no bf16)
# ---------------------------------------------------------------------------

def _conv_ref(x, w, stride, pad):
    return jax.lax.conv_general_dilated(
        x, jnp.transpose(w, (2, 3, 1, 0)), window_strides=(stride, stride),
        padding=((pad, pad), (pad, pad)), dimension_numbers=("NHWC", "HWIO", "NHWC"))


def _bn_ref(x, bn):
    return (x - bn["mean"]) * jax.lax.rsqrt(bn["var"] + BN_EPS) * bn["gamma"] + bn["beta"]


def _lrelu(x):
    return jnp.maximum(x, NEG_SLOPE * x)


def resnet_forward_f32_ref(params, x):
    out = _lrelu(_bn_ref(_conv_ref(x, params["conv1"], 1, 1), params["bn1"]))
    for layer in params["layers"]:
        for blk in layer:
            s = blk["stride"]
            o = _lrelu(_bn_ref(_conv_ref(out, blk["conv1"], s, 1), blk["bn1"]))
            o = _bn_ref(_conv_ref(o, blk["conv2"], 1, 1), blk["bn2"])
            sc = (_bn_ref(_conv_ref(out, blk["sc_conv"], s, 0), blk["sc_bn"])
                  if "sc_conv" in blk else out)
            out = _lrelu(o + sc)
    pooled = jnp.mean(out, axis=(1, 2))               # avg_pool2d(4) on 4x4 map + flatten
    return pooled @ params["fc_w"].T + params["fc_b"]


# ---------------------------------------------------------------------------
# Demo / self-check
# ---------------------------------------------------------------------------

if __name__ == "__main__":
    key = jax.random.PRNGKey(0)
    kp, kx = jax.random.split(key)
    # Small configuration (one BasicBlock per stage) to keep compile/run time short while
    # exercising every structural case: stride-1 identity block, stride-2 shortcut-conv blocks.
    params = init_params(kp, num_blocks=(1, 1, 1, 1), num_classes=10)
    prep_bf16 = prepare_params(params, jnp.bfloat16)

    N = 2
    x_nchw = jax.random.normal(kx, (N, 3, 32, 32), jnp.float32)         # CIFAR-sized input
    x_nhwc = jnp.transpose(x_nchw, (0, 2, 3, 1))

    out = resnet_forward(prep_bf16, x_nhwc, use_pallas=True)
    out = jax.block_until_ready(out)
    assert out.shape == (N, 10)
    assert bool(jnp.all(jnp.isfinite(out)))

    # Check 1 (kernel correctness): identical math (bf16 im2col + bf16 matmul + folded BN,
    # bf16 feature maps) via plain XLA.
    ref_matched = resnet_forward(prep_bf16, x_nhwc, use_pallas=False)
    ref_matched = jax.block_until_ready(ref_matched)
    rel1 = float(jnp.linalg.norm(out - ref_matched) / (jnp.linalg.norm(ref_matched) + 1e-6))
    assert rel1 < 2e-2, f"Pallas vs matched XLA reference, rel err {rel1}"

    # Check 2 (semantics correctness): f32 im2col lowering vs independent lax.conv reference.
    prep_f32 = prepare_params(params, jnp.float32)
    ref_im2col_f32 = resnet_forward(prep_f32, x_nhwc, use_pallas=False)
    ref_f32 = resnet_forward_f32_ref(params, x_nhwc)
    rel2 = float(jnp.linalg.norm(ref_im2col_f32 - ref_f32) / (jnp.linalg.norm(ref_f32) + 1e-6))
    assert rel2 < 2e-2, f"im2col lowering vs lax.conv reference, rel err {rel2}"

    print("KERNEL_OK")
</pallas_src>

<mosaic_0001>
module attributes {stable_mosaic.version = 11 : i64} {
  func.func @_matmul_bn_kernel(%arg0: i32, %arg1: i32, %arg2: memref<1024x27xbf16, #tpu.memory_space<vmem>>, %arg3: memref<27x64xbf16, #tpu.memory_space<vmem>>, %arg4: memref<1x64xf32, #tpu.memory_space<vmem>>, %arg5: memref<1x64xf32, #tpu.memory_space<vmem>>, %arg6: memref<1024x64xbf16, #tpu.memory_space<vmem>>) attributes {dimension_semantics = [#tpu.dimension_semantics<parallel>, #tpu.dimension_semantics<parallel>], iteration_bounds = array<i64: 2, 1>, scalar_prefetch = 0 : i64, scratch_operands = 0 : i64, tpu.core_type = #tpu.core_type<tc>, window_params = [{transform_indices = @transform_0, window_bounds = array<i64: 1024, 27>}, {transform_indices = @transform_1, window_bounds = array<i64: 27, 64>}, {transform_indices = @transform_2, window_bounds = array<i64: 1, 64>}, {transform_indices = @transform_3, window_bounds = array<i64: 1, 64>}, {transform_indices = @transform_4, window_bounds = array<i64: 1024, 64>}]} {
    %c0 = arith.constant 0 : index
    %c0_0 = arith.constant 0 : index
    %0 = vector.load %arg2[%c0, %c0_0] : memref<1024x27xbf16, #tpu.memory_space<vmem>>, vector<1024x27xbf16>
    %c0_1 = arith.constant 0 : index
    %c0_2 = arith.constant 0 : index
    %1 = vector.load %arg3[%c0_1, %c0_2] : memref<27x64xbf16, #tpu.memory_space<vmem>>, vector<27x64xbf16>
    %cst = arith.constant dense<0.000000e+00> : vector<1024x64xf32>
    %2 = tpu.matmul %0, %1, %cst {dimension_numbers = #tpu.dot_dimension_numbers<[1], [0], [0], [1], [0, 0, 1, 1], [], []>} : vector<1024x27xbf16>, vector<27x64xbf16>, vector<1024x64xf32> -> vector<1024x64xf32>
    %c0_3 = arith.constant 0 : index
    %c0_4 = arith.constant 0 : index
    %3 = vector.load %arg4[%c0_3, %c0_4] : memref<1x64xf32, #tpu.memory_space<vmem>>, vector<1x64xf32>
    %4 = vector.broadcast %3 : vector<1x64xf32> to vector<1024x64xf32>
    %5 = arith.mulf %2, %4 : vector<1024x64xf32>
    %c0_5 = arith.constant 0 : index
    %c0_6 = arith.constant 0 : index
    %6 = vector.load %arg5[%c0_5, %c0_6] : memref<1x64xf32, #tpu.memory_space<vmem>>, vector<1x64xf32>
    %7 = vector.broadcast %6 : vector<1x64xf32> to vector<1024x64xf32>
    %8 = arith.addf %5, %7 : vector<1024x64xf32>
    %cst_7 = arith.constant 0.00999999977 : f32
    %9 = vector.broadcast %cst_7 : f32 to vector<1024x64xf32>
    %10 = arith.mulf %9, %8 : vector<1024x64xf32>
    %11 = arith.maximumf %8, %10 : vector<1024x64xf32>
    %12 = arith.truncf %11 : vector<1024x64xf32> to vector<1024x64xbf16>
    %c0_8 = arith.constant 0 : index
    %c0_9 = arith.constant 0 : index
    %13 = vector.load %arg6[%c0_8, %c0_9] : memref<1024x64xbf16, #tpu.memory_space<vmem>>, vector<1024x64xbf16>
    tpu.vector_store %arg6[%c0_8, %c0_9], %12 {strides = array<i32>} : memref<1024x64xbf16, #tpu.memory_space<vmem>>, vector<1024x64xbf16>,
    return
  }
  func.func @transform_0(%arg0: i32, %arg1: i32) -> (i32, i32) {
    %c0_i32 = arith.constant 0 : i32
    %c0_i32_0 = arith.constant 0 : i32
    return %arg0, %c0_i32 : i32, i32
  }
  func.func @transform_1(%arg0: i32, %arg1: i32) -> (i32, i32) {
    %c0_i32 = arith.constant 0 : i32
    %c0_i32_0 = arith.constant 0 : i32
    return %c0_i32, %arg1 : i32, i32
  }
  func.func @transform_2(%arg0: i32, %arg1: i32) -> (i32, i32) {
    %c0_i32 = arith.constant 0 : i32
    %c0_i32_0 = arith.constant 0 : i32
    return %c0_i32, %arg1 : i32, i32
  }
  func.func @transform_3(%arg0: i32, %arg1: i32) -> (i32, i32) {
    %c0_i32 = arith.constant 0 : i32
    %c0_i32_0 = arith.constant 0 : i32
    return %c0_i32, %arg1 : i32, i32
  }
  func.func @transform_4(%arg0: i32, %arg1: i32) -> (i32, i32) {
    %c0_i32 = arith.constant 0 : i32
    return %arg0, %arg1 : i32, i32
  }
}

</mosaic_0001>

<llo_original>
// kernel: tpu_custom_call.1
$region0: #{tpu_custom_call.1}
  #allocation0 [shape = 'u32[]', space=smem, size = 0x4, offset = 0x4, fixed_abs, tag = 'smem constant byte address 0x4 - core index']
  #allocation1 [shape = 'u32[72,128]{1,0:T(1,128)}', space=vmem, size = 0x9000, scoped, tag = 'internal scratch']
  %s0 = inlined_call_operand.vmem [shape: bf16[2048,27], index: 0, kind: input, shape index: {}]
  %s1 = inlined_call_operand.vmem [shape: bf16[27,64], index: 1, kind: input, shape index: {}]
  %s2 = inlined_call_operand.vmem [shape: f32[1,64], index: 2, kind: input, shape index: {}]
  %s3 = inlined_call_operand.vmem [shape: f32[1,64], index: 3, kind: input, shape index: {}]
  %s4 = inlined_call_operand.vmem [shape: bf16[2048,64], index: 4, kind: output, shape index: {}]
  %s5 = sld [smem:[#allocation0]]
  $region49: #{tpu_custom_call.1} parent=0
    _
  %s7 = ssub.s32 1, %s5
  %s8 = scalar_select 0, %s7, %s5
  loop: start=0, step=1, limit=4
  $region2: #{tpu_custom_call.1} parent=0 // loop_pre_header
    _
  $region3: #{tpu_custom_call.1} parent=0 // loop_header
    %s10 = sphi 0, %s14
    %p11 = scmp.ge.s32.totalorder %s10, 4
    %s17 = sphi 0, %s29
    %s18 = sphi 0, %s25
    %s19 = sphi 0, %s17
    %s20 = sphi 0, %s18
    %s21 = sphi 0, %s19
    %s22 = sphi 0, %s20
    %s32 = sphi 0, %s34
    %s35 = sphi 0, %s32
    %s36 = sphi 0, %s35
    %s52 = sphi 0, %s36
    %s58 = sphi 0, %s60
    %s61 = sphi 0, %s58
    %s62 = sphi 0, %s61
    %s78 = sphi 0, %s62
    %s84 = sphi 0, %s86
    %s87 = sphi 0, %s84
    %s88 = sphi 0, %s87
    %s104 = sphi 0, %s88
    %s110 = sphi 0, %s112
    %s113 = sphi 0, %s110
    %s114 = sphi 0, %s113
    %s130 = sphi 0, %s114
    %s138 = sphi 0, %s140
    %s141 = sphi 0, %s138
    %s142 = sphi 0, %s141
    %s158 = sphi 0, %s142
  $region4: #{tpu_custom_call.1} parent=0 // loop_header_branch
    %13 = sbr.rel (%p11) target = $region8
  $region5: #{tpu_custom_call.1} parent=0 // loop_body
    %s15 = ssub.s32 %s10, 1
    %s16 = ssub.s32 %s10, 2
    %s23 = sadd.s32 1, %s18
    %p24 = scmp.ge.s32.totalorder %s23, 1
    %s25 = scalar_select %p24, 0, %s23
    %s26 = sadd.s32 1, %s17
    %s27 = scalar_select %p24, %s26, %s17
    %p28 = scmp.ge.s32.totalorder %s27, 2
    %s29 = scalar_select %p28, 0, %s27
    %s30 = ssub.s32 %s17, %s29
    %p31 = scmp.eq.s32.totalorder %s30, 0
    %s33 = sadd.s32 %s32, 1
    %s34 = scalar_select %p31, %s32, %s33
    %p37 = pneg %p31
    %p38 = scmp.eq.s32.totalorder %s10, 1
    %p39 = por %p37, %p38
    %p40 = scmp.ne.s32.totalorder %s32, %s35
    %p41 = scmp.eq.s32.totalorder %s10, 0
    %p42 = por %p40, %p41
    %p43 = scmp.ne.s32.totalorder %s32, %s35
    %p44 = scmp.eq.s32.totalorder %s15, 1
    %p45 = por %p43, %p44
    %p46 = scmp.ne.s32.totalorder %s35, %s36
    %p47 = scmp.eq.s32.totalorder %s15, 0
    %p48 = por %p46, %p47
    %p49 = scmp.ne.s32.totalorder %s35, %s36
    %p50 = scmp.eq.s32.totalorder %s16, 1
    %p51 = por %p49, %p50
    %p53 = scmp.ne.s32.totalorder %s36, %s52
    %p54 = scmp.eq.s32.totalorder %s16, 0
    %p55 = por %p53, %p54
    %s56 = ssub.s32 %s18, %s25
    %p57 = scmp.eq.s32.totalorder %s56, 0
    %s59 = sadd.s32 %s58, 1
    %s60 = scalar_select %p57, %s58, %s59
    %p63 = pneg %p57
    %p64 = scmp.eq.s32.totalorder %s10, 1
    %p65 = por %p63, %p64
    %p66 = scmp.ne.s32.totalorder %s58, %s61
    %p67 = scmp.eq.s32.totalorder %s10, 0
    %p68 = por %p66, %p67
    %p69 = scmp.ne.s32.totalorder %s58, %s61
    %p70 = scmp.eq.s32.totalorder %s15, 1
    %p71 = por %p69, %p70
    %p72 = scmp.ne.s32.totalorder %s61, %s62
    %p73 = scmp.eq.s32.totalorder %s15, 0
    %p74 = por %p72, %p73
    %p75 = scmp.ne.s32.totalorder %s61, %s62
    %p76 = scmp.eq.s32.totalorder %s16, 1
    %p77 = por %p75, %p76
    %p79 = scmp.ne.s32.totalorder %s62, %s78
    %p80 = scmp.eq.s32.totalorder %s16, 0
    %p81 = por %p79, %p80
    %s82 = ssub.s32 %s18, %s25
    %p83 = scmp.eq.s32.totalorder %s82, 0
    %s85 = sadd.s32 %s84, 1
    %s86 = scalar_select %p83, %s84, %s85
    %p89 = pneg %p83
    %p90 = scmp.eq.s32.totalorder %s10, 1
    %p91 = por %p89, %p90
    %p92 = scmp.ne.s32.totalorder %s84, %s87
    %p93 = scmp.eq.s32.totalorder %s10, 0
    %p94 = por %p92, %p93
    %p95 = scmp.ne.s32.totalorder %s84, %s87
    %p96 = scmp.eq.s32.totalorder %s15, 1
    %p97 = por %p95, %p96
    %p98 = scmp.ne.s32.totalorder %s87, %s88
    %p99 = scmp.eq.s32.totalorder %s15, 0
    %p100 = por %p98, %p99
    %p101 = scmp.ne.s32.totalorder %s87, %s88
    %p102 = scmp.eq.s32.totalorder %s16, 1
    %p103 = por %p101, %p102
    %p105 = scmp.ne.s32.totalorder %s88, %s104
    %p106 = scmp.eq.s32.totalorder %s16, 0
    %p107 = por %p105, %p106
    %s108 = ssub.s32 %s18, %s25
    %p109 = scmp.eq.s32.totalorder %s108, 0
    %s111 = sadd.s32 %s110, 1
    %s112 = scalar_select %p109, %s110, %s111
    %p115 = pneg %p109
    %p116 = scmp.eq.s32.totalorder %s10, 1
    %p117 = por %p115, %p116
    %p118 = scmp.ne.s32.totalorder %s110, %s113
    %p119 = scmp.eq.s32.totalorder %s10, 0
    %p120 = por %p118, %p119
    %p121 = scmp.ne.s32.totalorder %s110, %s113
    %p122 = scmp.eq.s32.totalorder %s15, 1
    %p123 = por %p121, %p122
    %p124 = scmp.ne.s32.totalorder %s113, %s114
    %p125 = scmp.eq.s32.totalorder %s15, 0
    %p126 = por %p124, %p125
    %p127 = scmp.ne.s32.totalorder %s113, %s114
    %p128 = scmp.eq.s32.totalorder %s16, 1
    %p129 = por %p127, %p128
    %p131 = scmp.ne.s32.totalorder %s114, %s130
    %p132 = scmp.eq.s32.totalorder %s16, 0
    %p133 = por %p131, %p132
    %s134 = ssub.s32 %s17, %s29
    %s135 = ssub.s32 %s18, %s25
    %s136 = sor.u32 %s134, %s135
    %p137 = scmp.eq.s32.totalorder %s136, 0
    %s139 = sadd.s32 %s138, 1
    %s140 = scalar_select %p137, %s138, %s139
    %p143 = pneg %p137
    %p144 = scmp.eq.s32.totalorder %s10, 1
    %p145 = por %p143, %p144
    %p146 = scmp.ne.s32.totalorder %s138, %s141
    %p147 = scmp.eq.s32.totalorder %s10, 0
    %p148 = por %p146, %p147
    %p149 = scmp.ne.s32.totalorder %s138, %s141
    %p150 = scmp.eq.s32.totalorder %s15, 1
    %p151 = por %p149, %p150
    %p152 = scmp.ne.s32.totalorder %s141, %s142
    %p153 = scmp.eq.s32.totalorder %s15, 0
    %p154 = por %p152, %p153
    %p155 = scmp.ne.s32.totalorder %s141, %s142
    %p156 = scmp.eq.s32.totalorder %s16, 1
    %p157 = por %p155, %p156
    %p159 = scmp.ne.s32.totalorder %s142, %s158
    %p160 = scmp.eq.s32.totalorder %s16, 0
    %p161 = por %p159, %p160
    %p162 = scmp.le.s32.totalorder 1, %s10
    %p163 = scmp.lt.s32.totalorder %s10, 3
    %p164 = pnand %p162, %p163
    %p165 = pneg %p164
    // Predicated region
    $region9: #{tpu_custom_call.1} parent=5 // pred_check
      _
    $region10: #{tpu_custom_call.1} parent=5 // pred_check_branch
      %167 = sbr.rel (%p164) target = $region12
    $region11: #{tpu_custom_call.1} parent=5 // pred_region
      %s168 = ssub.s32 %s10, 1
      // Predicated region
      $region13: #{tpu_custom_call.1} parent=11 // pred_check
        %p169 = pneg %p74
      $region14: #{tpu_custom_call.1} parent=11 // pred_check_branch
        %171 = sbr.rel (%p169) target = $region16
      $region15: #{tpu_custom_call.1} parent=11 // pred_region
        %p172 = scmp.lt.s32.totalorder %s20, 0
        %s173 = scalar_select %p172, %s20, 0
        %s174 = smul.addr %s173, 4
        %s175 = scalar_lea.vmem %s1, %s174
      $region16: #{tpu_custom_call.1} parent=11 // pred_fallthru
        _
      // Predicated region
      $region17: #{tpu_custom_call.1} parent=11 // pred_check
        %p176 = pneg %p100
      $region18: #{tpu_custom_call.1} parent=11 // pred_check_branch
        %178 = sbr.rel (%p176) target = $region20
      $region19: #{tpu_custom_call.1} parent=11 // pred_region
        %p179 = scmp.lt.s32.totalorder %s20, 0
        %s180 = scalar_select %p179, %s20, 0
        %s181 = scalar_lea.vmem %s2, %s180
      $region20: #{tpu_custom_call.1} parent=11 // pred_fallthru
        _
      // Predicated region
      $region21: #{tpu_custom_call.1} parent=11 // pred_check
        %p182 = pneg %p126
      $region22: #{tpu_custom_call.1} parent=11 // pred_check_branch
        %184 = sbr.rel (%p182) target = $region24
      $region23: #{tpu_custom_call.1} parent=11 // pred_region
        %p185 = scmp.lt.s32.totalorder %s20, 0
        %s186 = scalar_select %p185, %s20, 0
        %s187 = scalar_lea.vmem %s3, %s186
      $region24: #{tpu_custom_call.1} parent=11 // pred_fallthru
        _
    $region12: #{tpu_custom_call.1} parent=5 // pred_fallthru
      _
    %p188 = scmp.lt.s32.totalorder %s10, 2
    // Predicated region
    $region25: #{tpu_custom_call.1} parent=5 // pred_check
      %p189 = pneg %p188
    $region26: #{tpu_custom_call.1} parent=5 // pred_check_branch
      %191 = sbr.rel (%p189) target = $region28
    $region27: #{tpu_custom_call.1} parent=5 // pred_region
      // Predicated region
      $region29: #{tpu_custom_call.1} parent=27 // pred_check
        %p192 = pneg %p42
      $region30: #{tpu_custom_call.1} parent=27 // pred_check_branch
        %194 = sbr.rel (%p192) target = $region32
      $region31: #{tpu_custom_call.1} parent=27 // pred_region
        %s195 = smul.u32 128, %s17
        %p196 = scmp.lt.s32.totalorder %s195, 255
        %s197 = scalar_select %p196, %s195, 255
        %s198 = smul.addr %s197, 4
        %s199 = scalar_lea.vmem %s0, %s198
        %s200 = smul.u32 128, %s17
      $region32: #{tpu_custom_call.1} parent=27 // pred_fallthru
        _
    $region28: #{tpu_custom_call.1} parent=5 // pred_fallthru
      _
    %p201 = scmp.le.s32.totalorder 1, %s10
    %p202 = scmp.lt.s32.totalorder %s10, 3
    %p203 = pnand %p201, %p202
    %p204 = pneg %p203
    // Predicated region
    $region33: #{tpu_custom_call.1} parent=5 // pred_check
      _
    $region34: #{tpu_custom_call.1} parent=5 // pred_check_branch
      %206 = sbr.rel (%p203) target = $region36
    $region35: #{tpu_custom_call.1} parent=5 // pred_region
      %s207 = ssub.s32 %s10, 1
      %s208 = smul.u32 128, %s19
      %p209 = scmp.lt.s32.totalorder %s208, 255
      %s210 = scalar_select %p209, %s208, 255
      %s211 = smul.addr %s210, 4
      %s212 = scalar_lea.vmem %s0, %s211
      %p213 = pneg %p48
      %p214 = pneg %p45
      %p215 = scmp.lt.s32.totalorder %s20, 0
      %s216 = scalar_select %p215, %s20, 0
      %s217 = smul.addr %s216, 4
      %s218 = scalar_lea.vmem %s1, %s217
      %p219 = pneg %p74
      %p220 = pneg %p71
      %p221 = scmp.lt.s32.totalorder %s20, 0
      %s222 = scalar_select %p221, %s20, 0
      %s223 = scalar_lea.vmem %s2, %s222
      %p224 = pneg %p100
      %p225 = pneg %p97
      %p226 = scmp.lt.s32.totalorder %s20, 0
      %s227 = scalar_select %p226, %s20, 0
      %s228 = scalar_lea.vmem %s3, %s227
      %p229 = pneg %p126
      %p230 = pneg %p123
      %p231 = pneg %p154
      %p232 = pneg %p151
      %s233 = smul.u32 128, %s19
      %p234 = scmp.lt.s32.totalorder %s233, 255
      %s235 = scalar_select %p234, %s233, 255
      %p236 = scmp.lt.s32.totalorder %s20, 0
      %s237 = scalar_select %p236, %s20, 0
      %s238 = sadd.s32 %s237, %s235
      %s239 = smul.addr %s238, 4
      %s240 = scalar_lea.vmem %s4, %s239
      %s241 = smul.u32 128, %s19
      %p242 = scmp.lt.s32.totalorder %s241, 255
      %s243 = scalar_select %p242, %s241, 255
      %s244 = smul.addr %s243, 4
      %s245 = scalar_lea.vmem %s0, %s244
      %s246 = smul.u32 128, %s19
      %p247 = scmp.lt.s32.totalorder %s20, 0
      %s248 = scalar_select %p247, %s20, 0
      %s249 = smul.addr %s248, 4
      %s250 = scalar_lea.vmem %s1, %s249
      %p251 = scmp.lt.s32.totalorder %s20, 0
      %s252 = scalar_select %p251, %s20, 0
      %s253 = scalar_lea.vmem %s2, %s252
      %p254 = scmp.lt.s32.totalorder %s20, 0
      %s255 = scalar_select %p254, %s20, 0
      %s256 = scalar_lea.vmem %s3, %s255
      %s257 = smul.u32 128, %s19
      %p258 = scmp.lt.s32.totalorder %s257, 255
      %s259 = scalar_select %p258, %s257, 255
      %p260 = scmp.lt.s32.totalorder %s20, 0
      %s261 = scalar_select %p260, %s20, 0
      %s262 = sadd.s32 %s261, %s259
      %s263 = smul.addr %s262, 4
      %s264 = scalar_lea.vmem %s4, %s263
      %s265 = smul.u32 128, %s19
      %v267 = vld [vmem:[%s245] sm:$0xf]
      %v268 = vld [vmem:[%s245 + $0x4] sm:$0xf]
      %v269 = vld [vmem:[%s245 + $0x8] sm:$0xf]
      %v270 = vld [vmem:[%s245 + $0xc] sm:$0xf]
      %v271 = vld [vmem:[%s245 + $0x10] sm:$0xf]
      %v272 = vld [vmem:[%s245 + $0x14] sm:$0xf]
      %v273 = vld [vmem:[%s245 + $0x18] sm:$0xf]
      %v274 = vld [vmem:[%s245 + $0x1c] sm:$0xf]
      %v275 = vld [vmem:[%s245 + $0x20] sm:$0xf]
      %v276 = vld [vmem:[%s245 + $0x24] sm:$0xf]
      %v277 = vld [vmem:[%s245 + $0x28] sm:$0xf]
      %v278 = vld [vmem:[%s245 + $0x2c] sm:$0xf]
      %v279 = vld [vmem:[%s245 + $0x30] sm:$0xf]
      %v280 = vld [vmem:[%s245 + $0x34] sm:$0xf]
      %v281 = vld [vmem:[%s245 + $0x38] sm:$0xf]
      %v282 = vld [vmem:[%s245 + $0x3c] sm:$0xf]
      %v283 = vld [vmem:[%s245 + $0x40] sm:$0xf]
      %v284 = vld [vmem:[%s245 + $0x44] sm:$0xf]
      %v285 = vld [vmem:[%s245 + $0x48] sm:$0xf]
      %v286 = vld [vmem:[%s245 + $0x4c] sm:$0xf]
      %v287 = vld [vmem:[%s245 + $0x50] sm:$0xf]
      %v288 = vld [vmem:[%s245 + $0x54] sm:$0xf]
      %v289 = vld [vmem:[%s245 + $0x58] sm:$0xf]
      %v290 = vld [vmem:[%s245 + $0x5c] sm:$0xf]
      %v291 = vld [vmem:[%s245 + $0x60] sm:$0xf]
      %v292 = vld [vmem:[%s245 + $0x64] sm:$0xf]
      %v293 = vld [vmem:[%s245 + $0x68] sm:$0xf]
      %v294 = vld [vmem:[%s245 + $0x6c] sm:$0xf]
      %v295 = vld [vmem:[%s245 + $0x70] sm:$0xf]
      %v296 = vld [vmem:[%s245 + $0x74] sm:$0xf]
      %v297 = vld [vmem:[%s245 + $0x78] sm:$0xf]
      %v298 = vld [vmem:[%s245 + $0x7c] sm:$0xf]
      %v299 = vld [vmem:[%s245 + $0x80] sm:$0xf]
      %v300 = vld [vmem:[%s245 + $0x84] sm:$0xf]
      %v301 = vld [vmem:[%s245 + $0x88] sm:$0xf]
      %v302 = vld [vmem:[%s245 + $0x8c] sm:$0xf]
      %v303 = vld [vmem:[%s245 + $0x90] sm:$0xf]
      %v304 = vld [vmem:[%s245 + $0x94] sm:$0xf]
      %v305 = vld [vmem:[%s245 + $0x98] sm:$0xf]
      %v306 = vld [vmem:[%s245 + $0x9c] sm:$0xf]
      %v307 = vld [vmem:[%s245 + $0xa0] sm:$0xf]
      %v308 = vld [vmem:[%s245 + $0xa4] sm:$0xf]
      %v309 = vld [vmem:[%s245 + $0xa8] sm:$0xf]
      %v310 = vld [vmem:[%s245 + $0xac] sm:$0xf]
      %v311 = vld [vmem:[%s245 + $0xb0] sm:$0xf]
      %v312 = vld [vmem:[%s245 + $0xb4] sm:$0xf]
      %v313 = vld [vmem:[%s245 + $0xb8] sm:$0xf]
      %v314 = vld [vmem:[%s245 + $0xbc] sm:$0xf]
      %v315 = vld [vmem:[%s245 + $0xc0] sm:$0xf]
      %v316 = vld [vmem:[%s245 + $0xc4] sm:$0xf]
      %v317 = vld [vmem:[%s245 + $0xc8] sm:$0xf]
      %v318 = vld [vmem:[%s245 + $0xcc] sm:$0xf]
      %v319 = vld [vmem:[%s245 + $0xd0] sm:$0xf]
      %v320 = vld [vmem:[%s245 + $0xd4] sm:$0xf]
      %v321 = vld [vmem:[%s245 + $0xd8] sm:$0xf]
      %v322 = vld [vmem:[%s245 + $0xdc] sm:$0xf]
      %v323 = vld [vmem:[%s245 + $0xe0] sm:$0xf]
      %v324 = vld [vmem:[%s245 + $0xe4] sm:$0xf]
      %v325 = vld [vmem:[%s245 + $0xe8] sm:$0xf]
      %v326 = vld [vmem:[%s245 + $0xec] sm:$0xf]
      %v327 = vld [vmem:[%s245 + $0xf0] sm:$0xf]
      %v328 = vld [vmem:[%s245 + $0xf4] sm:$0xf]
      %v329 = vld [vmem:[%s245 + $0xf8] sm:$0xf]
      %v330 = vld [vmem:[%s245 + $0xfc] sm:$0xf]
      %v331 = vld [vmem:[%s245 + $0x100] sm:$0xf]
      %v332 = vld [vmem:[%s245 + $0x104] sm:$0xf]
      %v333 = vld [vmem:[%s245 + $0x108] sm:$0xf]
      %v334 = vld [vmem:[%s245 + $0x10c] sm:$0xf]
      %v335 = vld [vmem:[%s245 + $0x110] sm:$0xf]
      %v336 = vld [vmem:[%s245 + $0x114] sm:$0xf]
      %v337 = vld [vmem:[%s245 + $0x118] sm:$0xf]
      %v338 = vld [vmem:[%s245 + $0x11c] sm:$0xf]
      %v339 = vld [vmem:[%s245 + $0x120] sm:$0xf]
      %v340 = vld [vmem:[%s245 + $0x124] sm:$0xf]
      %v341 = vld [vmem:[%s245 + $0x128] sm:$0xf]
      %v342 = vld [vmem:[%s245 + $0x12c] sm:$0xf]
      %v343 = vld [vmem:[%s245 + $0x130] sm:$0xf]
      %v344 = vld [vmem:[%s245 + $0x134] sm:$0xf]
      %v345 = vld [vmem:[%s245 + $0x138] sm:$0xf]
      %v346 = vld [vmem:[%s245 + $0x13c] sm:$0xf]
      %v347 = vld [vmem:[%s245 + $0x140] sm:$0xf]
      %v348 = vld [vmem:[%s245 + $0x144] sm:$0xf]
      %v349 = vld [vmem:[%s245 + $0x148] sm:$0xf]
      %v350 = vld [vmem:[%s245 + $0x14c] sm:$0xf]
      %v351 = vld [vmem:[%s245 + $0x150] sm:$0xf]
      %v352 = vld [vmem:[%s245 + $0x154] sm:$0xf]
      %v353 = vld [vmem:[%s245 + $0x158] sm:$0xf]
      %v354 = vld [vmem:[%s245 + $0x15c] sm:$0xf]
      %v355 = vld [vmem:[%s245 + $0x160] sm:$0xf]
      %v356 = vld [vmem:[%s245 + $0x164] sm:$0xf]
      %v357 = vld [vmem:[%s245 + $0x168] sm:$0xf]
      %v358 = vld [vmem:[%s245 + $0x16c] sm:$0xf]
      %v359 = vld [vmem:[%s245 + $0x170] sm:$0xf]
      %v360 = vld [vmem:[%s245 + $0x174] sm:$0xf]
      %v361 = vld [vmem:[%s245 + $0x178] sm:$0xf]
      %v362 = vld [vmem:[%s245 + $0x17c] sm:$0xf]
      %v363 = vld [vmem:[%s245 + $0x180] sm:$0xf]
      %v364 = vld [vmem:[%s245 + $0x184] sm:$0xf]
      %v365 = vld [vmem:[%s245 + $0x188] sm:$0xf]
      %v366 = vld [vmem:[%s245 + $0x18c] sm:$0xf]
      %v367 = vld [vmem:[%s245 + $0x190] sm:$0xf]
      %v368 = vld [vmem:[%s245 + $0x194] sm:$0xf]
      %v369 = vld [vmem:[%s245 + $0x198] sm:$0xf]
      %v370 = vld [vmem:[%s245 + $0x19c] sm:$0xf]
      %v371 = vld [vmem:[%s245 + $0x1a0] sm:$0xf]
      %v372 = vld [vmem:[%s245 + $0x1a4] sm:$0xf]
      %v373 = vld [vmem:[%s245 + $0x1a8] sm:$0xf]
      %v374 = vld [vmem:[%s245 + $0x1ac] sm:$0xf]
      %v375 = vld [vmem:[%s245 + $0x1b0] sm:$0xf]
      %v376 = vld [vmem:[%s245 + $0x1b4] sm:$0xf]
      %v377 = vld [vmem:[%s245 + $0x1b8] sm:$0xf]
      %v378 = vld [vmem:[%s245 + $0x1bc] sm:$0xf]
      %v379 = vld [vmem:[%s245 + $0x1c0] sm:$0xf]
      %v380 = vld [vmem:[%s245 + $0x1c4] sm:$0xf]
      %v381 = vld [vmem:[%s245 + $0x1c8] sm:$0xf]
      %v382 = vld [vmem:[%s245 + $0x1cc] sm:$0xf]
      %v383 = vld [vmem:[%s245 + $0x1d0] sm:$0xf]
      %v384 = vld [vmem:[%s245 + $0x1d4] sm:$0xf]
      %v385 = vld [vmem:[%s245 + $0x1d8] sm:$0xf]
      %v386 = vld [vmem:[%s245 + $0x1dc] sm:$0xf]
      %v387 = vld [vmem:[%s245 + $0x1e0] sm:$0xf]
      %v388 = vld [vmem:[%s245 + $0x1e4] sm:$0xf]
      %v389 = vld [vmem:[%s245 + $0x1e8] sm:$0xf]
      %v390 = vld [vmem:[%s245 + $0x1ec] sm:$0xf]
      %v391 = vld [vmem:[%s245 + $0x1f0] sm:$0xf]
      %v392 = vld [vmem:[%s245 + $0x1f4] sm:$0xf]
      %v393 = vld [vmem:[%s245 + $0x1f8] sm:$0xf]
      %v394 = vld [vmem:[%s245 + $0x1fc] sm:$0xf]
      %v395 = vld [vmem:[%s250] sm:$0xf]
      %v396 = vld [vmem:[%s250 + $0x4] sm:$0xf]
      %v397 = vld [vmem:[%s250 + $0x8] sm:$0xf]
      %v398 = vld [vmem:[%s250 + $0xc] sm:$0x3]
      %v527 = vunpack.c.l.b16 %v267
      %v528 = vunpack.c.l.b16 %v268
      %v529 = vunpack.c.l.b16 %v269
      %v530 = vunpack.c.l.b16 %v270
      %v531 = vunpack.c.l.b16 %v271
      %v532 = vunpack.c.l.b16 %v272
      %v533 = vunpack.c.l.b16 %v273
      %v534 = vunpack.c.l.b16 %v274
      %v535 = vunpack.c.l.b16 %v275
      %v536 = vunpack.c.l.b16 %v276
      %v537 = vunpack.c.l.b16 %v277
      %v538 = vunpack.c.l.b16 %v278
      %v539 = vunpack.c.l.b16 %v279
      %v540 = vunpack.c.l.b16 %v280
      %v541 = vunpack.c.l.b16 %v281
      %v542 = vunpack.c.l.b16 %v282
      %v543 = vunpack.c.l.b16 %v283
      %v544 = vunpack.c.l.b16 %v284
      %v545 = vunpack.c.l.b16 %v285
      %v546 = vunpack.c.l.b16 %v286
      %v547 = vunpack.c.l.b16 %v287
      %v548 = vunpack.c.l.b16 %v288
      %v549 = vunpack.c.l.b16 %v289
      %v550 = vunpack.c.l.b16 %v290
      %v551 = vunpack.c.l.b16 %v291
      %v552 = vunpack.c.l.b16 %v292
      %v553 = vunpack.c.l.b16 %v293
      %v554 = vunpack.c.l.b16 %v294
      %v555 = vunpack.c.l.b16 %v295
      %v556 = vunpack.c.l.b16 %v296
      %v557 = vunpack.c.l.b16 %v297
      %v558 = vunpack.c.l.b16 %v298
      %v559 = vunpack.c.l.b16 %v299
      %v560 = vunpack.c.l.b16 %v300
      %v561 = vunpack.c.l.b16 %v301
      %v562 = vunpack.c.l.b16 %v302
      %v563 = vunpack.c.l.b16 %v303
      %v564 = vunpack.c.l.b16 %v304
      %v565 = vunpack.c.l.b16 %v305
      %v566 = vunpack.c.l.b16 %v306
      %v567 = vunpack.c.l.b16 %v307
      %v568 = vunpack.c.l.b16 %v308
      %v569 = vunpack.c.l.b16 %v309
      %v570 = vunpack.c.l.b16 %v310
      %v571 = vunpack.c.l.b16 %v311
      %v572 = vunpack.c.l.b16 %v312
      %v573 = vunpack.c.l.b16 %v313
      %v574 = vunpack.c.l.b16 %v314
      %v575 = vunpack.c.l.b16 %v315
      %v576 = vunpack.c.l.b16 %v316
      %v577 = vunpack.c.l.b16 %v317
      %v578 = vunpack.c.l.b16 %v318
      %v579 = vunpack.c.l.b16 %v319
      %v580 = vunpack.c.l.b16 %v320
      %v581 = vunpack.c.l.b16 %v321
      %v582 = vunpack.c.l.b16 %v322
      %v583 = vunpack.c.l.b16 %v323
      %v584 = vunpack.c.l.b16 %v324
      %v585 = vunpack.c.l.b16 %v325
      %v586 = vunpack.c.l.b16 %v326
      %v587 = vunpack.c.l.b16 %v327
      %v588 = vunpack.c.l.b16 %v328
      %v589 = vunpack.c.l.b16 %v329
      %v590 = vunpack.c.l.b16 %v330
      %v591 = vunpack.c.l.b16 %v331
      %v592 = vunpack.c.l.b16 %v332
      %v593 = vunpack.c.l.b16 %v333
      %v594 = vunpack.c.l.b16 %v334
      %v595 = vunpack.c.l.b16 %v335
      %v596 = vunpack.c.l.b16 %v336
      %v597 = vunpack.c.l.b16 %v337
      %v598 = vunpack.c.l.b16 %v338
      %v599 = vunpack.c.l.b16 %v339
      %v600 = vunpack.c.l.b16 %v340
      %v601 = vunpack.c.l.b16 %v341
      %v602 = vunpack.c.l.b16 %v342
      %v603 = vunpack.c.l.b16 %v343
      %v604 = vunpack.c.l.b16 %v344
      %v605 = vunpack.c.l.b16 %v345
      %v606 = vunpack.c.l.b16 %v346
      %v607 = vunpack.c.l.b16 %v347
      %v608 = vunpack.c.l.b16 %v348
      %v609 = vunpack.c.l.b16 %v349
      %v610 = vunpack.c.l.b16 %v350
      %v611 = vunpack.c.l.b16 %v351
      %v612 = vunpack.c.l.b16 %v352
      %v613 = vunpack.c.l.b16 %v353
      %v614 = vunpack.c.l.b16 %v354
      %v615 = vunpack.c.l.b16 %v355
      %v616 = vunpack.c.l.b16 %v356
      %v617 = vunpack.c.l.b16 %v357
      %v618 = vunpack.c.l.b16 %v358
      %v619 = vunpack.c.l.b16 %v359
      %v620 = vunpack.c.l.b16 %v360
      %v621 = vunpack.c.l.b16 %v361
      %v622 = vunpack.c.l.b16 %v362
      %v623 = vunpack.c.l.b16 %v363
      %v624 = vunpack.c.l.b16 %v364
      %v625 = vunpack.c.l.b16 %v365
      %v626 = vunpack.c.l.b16 %v366
      %v627 = vunpack.c.l.b16 %v367
      %v628 = vunpack.c.l.b16 %v368
      %v629 = vunpack.c.l.b16 %v369
      %v630 = vunpack.c.l.b16 %v370
      %v631 = vunpack.c.l.b16 %v371
      %v632 = vunpack.c.l.b16 %v372
      %v633 = vunpack.c.l.b16 %v373
      %v634 = vunpack.c.l.b16 %v374
      %v635 = vunpack.c.l.b16 %v375
      %v636 = vunpack.c.l.b16 %v376
      %v637 = vunpack.c.l.b16 %v377
      %v638 = vunpack.c.l.b16 %v378
      %v639 = vunpack.c.l.b16 %v379
      %v640 = vunpack.c.l.b16 %v380
      %v641 = vunpack.c.l.b16 %v381
      %v642 = vunpack.c.l.b16 %v382
      %v643 = vunpack.c.l.b16 %v383
      %v644 = vunpack.c.l.b16 %v384
      %v645 = vunpack.c.l.b16 %v385
      %v646 = vunpack.c.l.b16 %v386
      %v647 = vunpack.c.l.b16 %v387
      %v648 = vunpack.c.l.b16 %v388
      %v649 = vunpack.c.l.b16 %v389
      %v650 = vunpack.c.l.b16 %v390
      %v651 = vunpack.c.l.b16 %v391
      %v652 = vunpack.c.l.b16 %v392
      %v653 = vunpack.c.l.b16 %v393
      %v654 = vunpack.c.l.b16 %v394
      %v655 = vpack.c.b16 %v528, %v527
      %v656 = vpack.c.b16 %v530, %v529
      %v657 = vpack.c.b16 %v532, %v531
      %v658 = vpack.c.b16 %v534, %v533
      %v659 = vpack.c.b16 %v536, %v535
      %v660 = vpack.c.b16 %v538, %v537
      %v661 = vpack.c.b16 %v540, %v539
      %v662 = vpack.c.b16 %v542, %v541
      %v663 = vpack.c.b16 %v544, %v543
      %v664 = vpack.c.b16 %v546, %v545
      %v665 = vpack.c.b16 %v548, %v547
      %v666 = vpack.c.b16 %v550, %v549
      %v667 = vpack.c.b16 %v552, %v551
      %v668 = vpack.c.b16 %v554, %v553
      %v669 = vpack.c.b16 %v556, %v555
      %v670 = vpack.c.b16 %v558, %v557
      %v671 = vpack.c.b16 %v560, %v559
      %v672 = vpack.c.b16 %v562, %v561
      %v673 = vpack.c.b16 %v564, %v563
      %v674 = vpack.c.b16 %v566, %v565
      %v675 = vpack.c.b16 %v568, %v567
      %v676 = vpack.c.b16 %v570, %v569
      %v677 = vpack.c.b16 %v572, %v571
      %v678 = vpack.c.b16 %v574, %v573
      %v679 = vpack.c.b16 %v576, %v575
      %v680 = vpack.c.b16 %v578, %v577
      %v681 = vpack.c.b16 %v580, %v579
      %v682 = vpack.c.b16 %v582, %v581
      %v683 = vpack.c.b16 %v584, %v583
      %v684 = vpack.c.b16 %v586, %v585
      %v685 = vpack.c.b16 %v588, %v587
      %v686 = vpack.c.b16 %v590, %v589
      %v687 = vpack.c.b16 %v592, %v591
      %v688 = vpack.c.b16 %v594, %v593
      %v689 = vpack.c.b16 %v596, %v595
      %v690 = vpack.c.b16 %v598, %v597
      %v691 = vpack.c.b16 %v600, %v599
      %v692 = vpack.c.b16 %v602, %v601
      %v693 = vpack.c.b16 %v604, %v603
      %v694 = vpack.c.b16 %v606, %v605
      %v695 = vpack.c.b16 %v608, %v607
      %v696 = vpack.c.b16 %v610, %v609
      %v697 = vpack.c.b16 %v612, %v611
      %v698 = vpack.c.b16 %v614, %v613
      %v699 = vpack.c.b16 %v616, %v615
      %v700 = vpack.c.b16 %v618, %v617
      %v701 = vpack.c.b16 %v620, %v619
      %v702 = vpack.c.b16 %v622, %v621
      %v703 = vpack.c.b16 %v624, %v623
      %v704 = vpack.c.b16 %v626, %v625
      %v705 = vpack.c.b16 %v628, %v627
      %v706 = vpack.c.b16 %v630, %v629
      %v707 = vpack.c.b16 %v632, %v631
      %v708 = vpack.c.b16 %v634, %v633
      %v709 = vpack.c.b16 %v636, %v635
      %v710 = vpack.c.b16 %v638, %v637
      %v711 = vpack.c.b16 %v640, %v639
      %v712 = vpack.c.b16 %v642, %v641
      %v713 = vpack.c.b16 %v644, %v643
      %v714 = vpack.c.b16 %v646, %v645
      %v715 = vpack.c.b16 %v648, %v647
      %v716 = vpack.c.b16 %v650, %v649
      %v717 = vpack.c.b16 %v652, %v651
      %v718 = vpack.c.b16 %v654, %v653
      %v723 = vunpack.c.l.b16 %v395
      %v724 = vunpack.c.l.b16 %v396
      %v725 = vunpack.c.l.b16 %v397
      %v726 = vunpack.c.l.b16 %v398
      %v727 = vpack.c.b16 %v724, %v723
      %v728 = vpack.c.b16 %v726, %v725
      %vm730 = vcmask 220160
      %v732 = vsel %vm730, %v655, 0
      %v735 = vsel %vm730, %v656, 0
      %v738 = vsel %vm730, %v657, 0
      %v741 = vsel %vm730, %v658, 0
      %v744 = vsel %vm730, %v659, 0
      %v747 = vsel %vm730, %v660, 0
      %v750 = vsel %vm730, %v661, 0
      %v753 = vsel %vm730, %v662, 0
      %v756 = vsel %vm730, %v663, 0
      %v759 = vsel %vm730, %v664, 0
      %v762 = vsel %vm730, %v665, 0
      %v765 = vsel %vm730, %v666, 0
      %v768 = vsel %vm730, %v667, 0
      %v771 = vsel %vm730, %v668, 0
      %v774 = vsel %vm730, %v669, 0
      %v777 = vsel %vm730, %v670, 0
      %v780 = vsel %vm730, %v671, 0
      %v783 = vsel %vm730, %v672, 0
      %v786 = vsel %vm730, %v673, 0
      %v789 = vsel %vm730, %v674, 0
      %v792 = vsel %vm730, %v675, 0
      %v795 = vsel %vm730, %v676, 0
      %v798 = vsel %vm730, %v677, 0
      %v801 = vsel %vm730, %v678, 0
      %v804 = vsel %vm730, %v679, 0
      %v807 = vsel %vm730, %v680, 0
      %v810 = vsel %vm730, %v681, 0
      %v813 = vsel %vm730, %v682, 0
      %v816 = vsel %vm730, %v683, 0
      %v819 = vsel %vm730, %v684, 0
      %v822 = vsel %vm730, %v685, 0
      %v825 = vsel %vm730, %v686, 0
      %v828 = vsel %vm730, %v687, 0
      %v831 = vsel %vm730, %v688, 0
      %v834 = vsel %vm730, %v689, 0
      %v837 = vsel %vm730, %v690, 0
      %v840 = vsel %vm730, %v691, 0
      %v843 = vsel %vm730, %v692, 0
      %v846 = vsel %vm730, %v693, 0
      %v849 = vsel %vm730, %v694, 0
      %v852 = vsel %vm730, %v695, 0
      %v855 = vsel %vm730, %v696, 0
      %v858 = vsel %vm730, %v697, 0
      %v861 = vsel %vm730, %v698, 0
      %v864 = vsel %vm730, %v699, 0
      %v867 = vsel %vm730, %v700, 0
      %v870 = vsel %vm730, %v701, 0
      %v873 = vsel %vm730, %v702, 0
      %v876 = vsel %vm730, %v703, 0
      %v879 = vsel %vm730, %v704, 0
      %v882 = vsel %vm730, %v705, 0
      %v885 = vsel %vm730, %v706, 0
      %v888 = vsel %vm730, %v707, 0
      %v891 = vsel %vm730, %v708, 0
      %v894 = vsel %vm730, %v709, 0
      %v897 = vsel %vm730, %v710, 0
      %v900 = vsel %vm730, %v711, 0
      %v903 = vsel %vm730, %v712, 0
      %v906 = vsel %vm730, %v713, 0
      %v909 = vsel %vm730, %v714, 0
      %v912 = vsel %vm730, %v715, 0
      %v915 = vsel %vm730, %v716, 0
      %v918 = vsel %vm730, %v717, 0
      %v921 = vsel %vm730, %v718, 0
      %vm923 = vcmask 1044480
      %vm924 = vcmask 1045504
      %v925 = vsel %vm923, 4294967295, 65535
      %v926 = vsel %vm924, %v925, 0
      %v928 = vand.u32 %v728, %v926
      %930 = vmatpush.bf16.msra.mxu0 0
      %931 = vmatpush.bf16.msra.mxu0 0
      %932 = vmatpush.bf16.msra.mxu0 0
      %933 = vmatpush.bf16.msra.mxu0 0
      %934 = vmatpush.bf16.msra.mxu0 0
      %935 = vmatpush.bf16.msra.mxu0 0
      %936 = vmatpush.bf16.msra.mxu0 %v928
      %937 = vmatpush.bf16.msra.mxu0 %v727
      %938 = vmatmul.bf16.gmra.mxu0 %v732
      %v939 = vpop.f32.mrf.mxu0
      %v940 = vadd.f32 0.0, %v939
      %v941 = vpop.f32.mrf.mxu0
      %v942 = vadd.f32 0.0, %v941
      %943 = vmatmul.bf16.gmra.mxu0 %v735
      %v944 = vpop.f32.mrf.mxu0
      %v945 = vadd.f32 0.0, %v944
      %v946 = vpop.f32.mrf.mxu0
      %v947 = vadd.f32 0.0, %v946
      %948 = vmatmul.bf16.gmra.mxu0 %v738
      %v949 = vpop.f32.mrf.mxu0
      %v950 = vadd.f32 0.0, %v949
      %v951 = vpop.f32.mrf.mxu0
      %v952 = vadd.f32 0.0, %v951
      %953 = vmatmul.bf16.gmra.mxu0 %v741
      %v954 = vpop.f32.mrf.mxu0
      %v955 = vadd.f32 0.0, %v954
      %v956 = vpop.f32.mrf.mxu0
      %v957 = vadd.f32 0.0, %v956
      %958 = vmatmul.bf16.gmra.mxu0 %v744
      %v959 = vpop.f32.mrf.mxu0
      %v960 = vadd.f32 0.0, %v959
      %v961 = vpop.f32.mrf.mxu0
      %v962 = vadd.f32 0.0, %v961
      %963 = vmatmul.bf16.gmra.mxu0 %v747
      %v964 = vpop.f32.mrf.mxu0
      %v965 = vadd.f32 0.0, %v964
      %v966 = vpop.f32.mrf.mxu0
      %v967 = vadd.f32 0.0, %v966
      %968 = vmatmul.bf16.gmra.mxu0 %v750
      %v969 = vpop.f32.mrf.mxu0
      %v970 = vadd.f32 0.0, %v969
      %v971 = vpop.f32.mrf.mxu0
      %v972 = vadd.f32 0.0, %v971
      %973 = vmatmul.bf16.gmra.mxu0 %v753
      %v974 = vpop.f32.mrf.mxu0
      %v975 = vadd.f32 0.0, %v974
      %v976 = vpop.f32.mrf.mxu0
      %v977 = vadd.f32 0.0, %v976
      %978 = vmatmul.bf16.gmra.mxu0 %v756
      %v979 = vpop.f32.mrf.mxu0
      %v980 = vadd.f32 0.0, %v979
      %v981 = vpop.f32.mrf.mxu0
      %v982 = vadd.f32 0.0, %v981
      %983 = vmatmul.bf16.gmra.mxu0 %v759
      %v984 = vpop.f32.mrf.mxu0
      %v985 = vadd.f32 0.0, %v984
      %v986 = vpop.f32.mrf.mxu0
      %v987 = vadd.f32 0.0, %v986
      %988 = vmatmul.bf16.gmra.mxu0 %v762
      %v989 = vpop.f32.mrf.mxu0
      %v990 = vadd.f32 0.0, %v989
      %v991 = vpop.f32.mrf.mxu0
      %v992 = vadd.f32 0.0, %v991
      %993 = vmatmul.bf16.gmra.mxu0 %v765
      %v994 = vpop.f32.mrf.mxu0
      %v995 = vadd.f32 0.0, %v994
      %v996 = vpop.f32.mrf.mxu0
      %v997 = vadd.f32 0.0, %v996
      %998 = vmatmul.bf16.gmra.mxu0 %v768
      %v999 = vpop.f32.mrf.mxu0
      %v1000 = vadd.f32 0.0, %v999
      %v1001 = vpop.f32.mrf.mxu0
      %v1002 = vadd.f32 0.0, %v1001
      %1003 = vmatmul.bf16.gmra.mxu0 %v771
      %v1004 = vpop.f32.mrf.mxu0
      %v1005 = vadd.f32 0.0, %v1004
      %v1006 = vpop.f32.mrf.mxu0
      %v1007 = vadd.f32 0.0, %v1006
      %1008 = vmatmul.bf16.gmra.mxu0 %v774
      %v1009 = vpop.f32.mrf.mxu0
      %v1010 = vadd.f32 0.0, %v1009
      %v1011 = vpop.f32.mrf.mxu0
      %v1012 = vadd.f32 0.0, %v1011
      %1013 = vmatmul.bf16.gmra.mxu0 %v777
      %v1014 = vpop.f32.mrf.mxu0
      %v1015 = vadd.f32 0.0, %v1014
      %v1016 = vpop.f32.mrf.mxu0
      %v1017 = vadd.f32 0.0, %v1016
      %1018 = vmatmul.bf16.gmra.mxu0 %v780
      %v1019 = vpop.f32.mrf.mxu0
      %v1020 = vadd.f32 0.0, %v1019
      %v1021 = vpop.f32.mrf.mxu0
      %v1022 = vadd.f32 0.0, %v1021
      %1023 = vmatmul.bf16.gmra.mxu0 %v783
      %v1024 = vpop.f32.mrf.mxu0
      %v1025 = vadd.f32 0.0, %v1024
      %v1026 = vpop.f32.mrf.mxu0
      %v1027 = vadd.f32 0.0, %v1026
      %1028 = vmatmul.bf16.gmra.mxu0 %v786
      %v1029 = vpop.f32.mrf.mxu0
      %v1030 = vadd.f32 0.0, %v1029
      %v1031 = vpop.f32.mrf.mxu0
      %v1032 = vadd.f32 0.0, %v1031
      %1033 = vmatmul.bf16.gmra.mxu0 %v789
      %v1034 = vpop.f32.mrf.mxu0
      %v1035 = vadd.f32 0.0, %v1034
      %v1036 = vpop.f32.mrf.mxu0
      %v1037 = vadd.f32 0.0, %v1036
      %1038 = vmatmul.bf16.gmra.mxu0 %v792
      %v1039 = vpop.f32.mrf.mxu0
      %v1040 = vadd.f32 0.0, %v1039
      %v1041 = vpop.f32.mrf.mxu0
      %v1042 = vadd.f32 0.0, %v1041
      %1043 = vmatmul.bf16.gmra.mxu0 %v795
      %v1044 = vpop.f32.mrf.mxu0
      %v1045 = vadd.f32 0.0, %v1044
      %v1046 = vpop.f32.mrf.mxu0
      %v1047 = vadd.f32 0.0, %v1046
      %1048 = vmatmul.bf16.gmra.mxu0 %v798
      %v1049 = vpop.f32.mrf.mxu0
      %v1050 = vadd.f32 0.0, %v1049
      %v1051 = vpop.f32.mrf.mxu0
      %v1052 = vadd.f32 0.0, %v1051
      %1053 = vmatmul.bf16.gmra.mxu0 %v801
      %v1054 = vpop.f32.mrf.mxu0
      %v1055 = vadd.f32 0.0, %v1054
      %v1056 = vpop.f32.mrf.mxu0
      %v1057 = vadd.f32 0.0, %v1056
      %1058 = vmatmul.bf16.gmra.mxu0 %v804
      %v1059 = vpop.f32.mrf.mxu0
      %v1060 = vadd.f32 0.0, %v1059
      %v1061 = vpop.f32.mrf.mxu0
      %v1062 = vadd.f32 0.0, %v1061
      %1063 = vmatmul.bf16.gmra.mxu0 %v807
      %v1064 = vpop.f32.mrf.mxu0
      %v1065 = vadd.f32 0.0, %v1064
      %v1066 = vpop.f32.mrf.mxu0
      %v1067 = vadd.f32 0.0, %v1066
      %1068 = vmatmul.bf16.gmra.mxu0 %v810
      %v1069 = vpop.f32.mrf.mxu0
      %v1070 = vadd.f32 0.0, %v1069
      %v1071 = vpop.f32.mrf.mxu0
      %v1072 = vadd.f32 0.0, %v1071
      %1073 = vmatmul.bf16.gmra.mxu0 %v813
      %v1074 = vpop.f32.mrf.mxu0
      %v1075 = vadd.f32 0.0, %v1074
      %v1076 = vpop.f32.mrf.mxu0
      %v1077 = vadd.f32 0.0, %v1076
      %1078 = vmatmul.bf16.gmra.mxu0 %v816
      %v1079 = vpop.f32.mrf.mxu0
      %v1080 = vadd.f32 0.0, %v1079
      %v1081 = vpop.f32.mrf.mxu0
      %v1082 = vadd.f32 0.0, %v1081
      %1083 = vmatmul.bf16.gmra.mxu0 %v819
      %v1084 = vpop.f32.mrf.mxu0
      %v1085 = vadd.f32 0.0, %v1084
      %v1086 = vpop.f32.mrf.mxu0
      %v1087 = vadd.f32 0.0, %v1086
      %1088 = vmatmul.bf16.gmra.mxu0 %v822
      %v1089 = vpop.f32.mrf.mxu0
      %v1090 = vadd.f32 0.0, %v1089
      %v1091 = vpop.f32.mrf.mxu0
      %v1092 = vadd.f32 0.0, %v1091
      %1093 = vmatmul.bf16.gmra.mxu0 %v825
      %v1094 = vpop.f32.mrf.mxu0
      %v1095 = vadd.f32 0.0, %v1094
      %v1096 = vpop.f32.mrf.mxu0
      %v1097 = vadd.f32 0.0, %v1096
      %1098 = vmatmul.bf16.gmra.mxu0 %v828
      %v1099 = vpop.f32.mrf.mxu0
      %v1100 = vadd.f32 0.0, %v1099
      %v1101 = vpop.f32.mrf.mxu0
      %v1102 = vadd.f32 0.0, %v1101
      %1103 = vmatmul.bf16.gmra.mxu0 %v831
      %v1104 = vpop.f32.mrf.mxu0
      %v1105 = vadd.f32 0.0, %v1104
      %v1106 = vpop.f32.mrf.mxu0
      %v1107 = vadd.f32 0.0, %v1106
      %1108 = vmatmul.bf16.gmra.mxu0 %v834
      %v1109 = vpop.f32.mrf.mxu0
      %v1110 = vadd.f32 0.0, %v1109
      %v1111 = vpop.f32.mrf.mxu0
      %v1112 = vadd.f32 0.0, %v1111
      %1113 = vmatmul.bf16.gmra.mxu0 %v837
      %v1114 = vpop.f32.mrf.mxu0
      %v1115 = vadd.f32 0.0, %v1114
      %v1116 = vpop.f32.mrf.mxu0
      %v1117 = vadd.f32 0.0, %v1116
      %1118 = vmatmul.bf16.gmra.mxu0 %v840
      %v1119 = vpop.f32.mrf.mxu0
      %v1120 = vadd.f32 0.0, %v1119
      %v1121 = vpop.f32.mrf.mxu0
      %v1122 = vadd.f32 0.0, %v1121
      %1123 = vmatmul.bf16.gmra.mxu0 %v843
      %v1124 = vpop.f32.mrf.mxu0
      %v1125 = vadd.f32 0.0, %v1124
      %v1126 = vpop.f32.mrf.mxu0
      %v1127 = vadd.f32 0.0, %v1126
      %1128 = vmatmul.bf16.gmra.mxu0 %v846
      %v1129 = vpop.f32.mrf.mxu0
      %v1130 = vadd.f32 0.0, %v1129
      %v1131 = vpop.f32.mrf.mxu0
      %v1132 = vadd.f32 0.0, %v1131
      %1133 = vmatmul.bf16.gmra.mxu0 %v849
      %v1134 = vpop.f32.mrf.mxu0
      %v1135 = vadd.f32 0.0, %v1134
      %v1136 = vpop.f32.mrf.mxu0
      %v1137 = vadd.f32 0.0, %v1136
      %1138 = vmatmul.bf16.gmra.mxu0 %v852
      %v1139 = vpop.f32.mrf.mxu0
      %v1140 = vadd.f32 0.0, %v1139
      %v1141 = vpop.f32.mrf.mxu0
      %v1142 = vadd.f32 0.0, %v1141
      %1143 = vmatmul.bf16.gmra.mxu0 %v855
      %v1144 = vpop.f32.mrf.mxu0
      %v1145 = vadd.f32 0.0, %v1144
      %v1146 = vpop.f32.mrf.mxu0
      %v1147 = vadd.f32 0.0, %v1146
      %1148 = vmatmul.bf16.gmra.mxu0 %v858
      %v1149 = vpop.f32.mrf.mxu0
      %v1150 = vadd.f32 0.0, %v1149
      %v1151 = vpop.f32.mrf.mxu0
      %v1152 = vadd.f32 0.0, %v1151
      %1153 = vmatmul.bf16.gmra.mxu0 %v861
      %v1154 = vpop.f32.mrf.mxu0
      %v1155 = vadd.f32 0.0, %v1154
      %v1156 = vpop.f32.mrf.mxu0
      %v1157 = vadd.f32 0.0, %v1156
      %1158 = vmatmul.bf16.gmra.mxu0 %v864
      %v1159 = vpop.f32.mrf.mxu0
      %v1160 = vadd.f32 0.0, %v1159
      %v1161 = vpop.f32.mrf.mxu0
      %v1162 = vadd.f32 0.0, %v1161
      %1163 = vmatmul.bf16.gmra.mxu0 %v867
      %v1164 = vpop.f32.mrf.mxu0
      %v1165 = vadd.f32 0.0, %v1164
      %v1166 = vpop.f32.mrf.mxu0
      %v1167 = vadd.f32 0.0, %v1166
      %1168 = vmatmul.bf16.gmra.mxu0 %v870
      %v1169 = vpop.f32.mrf.mxu0
      %v1170 = vadd.f32 0.0, %v1169
      %v1171 = vpop.f32.mrf.mxu0
      %v1172 = vadd.f32 0.0, %v1171
      %1173 = vmatmul.bf16.gmra.mxu0 %v873
      %v1174 = vpop.f32.mrf.mxu0
      %v1175 = vadd.f32 0.0, %v1174
      %v1176 = vpop.f32.mrf.mxu0
      %v1177 = vadd.f32 0.0, %v1176
      %1178 = vmatmul.bf16.gmra.mxu0 %v876
      %v1179 = vpop.f32.mrf.mxu0
      %v1180 = vadd.f32 0.0, %v1179
      %v1181 = vpop.f32.mrf.mxu0
      %v1182 = vadd.f32 0.0, %v1181
      %1183 = vmatmul.bf16.gmra.mxu0 %v879
      %v1184 = vpop.f32.mrf.mxu0
      %v1185 = vadd.f32 0.0, %v1184
      %v1186 = vpop.f32.mrf.mxu0
      %v1187 = vadd.f32 0.0, %v1186
      %1188 = vmatmul.bf16.gmra.mxu0 %v882
      %v1189 = vpop.f32.mrf.mxu0
      %v1190 = vadd.f32 0.0, %v1189
      %v1191 = vpop.f32.mrf.mxu0
      %v1192 = vadd.f32 0.0, %v1191
      %1193 = vmatmul.bf16.gmra.mxu0 %v885
      %v1194 = vpop.f32.mrf.mxu0
      %v1195 = vadd.f32 0.0, %v1194
      %v1196 = vpop.f32.mrf.mxu0
      %v1197 = vadd.f32 0.0, %v1196
      %1198 = vmatmul.bf16.gmra.mxu0 %v888
      %v1199 = vpop.f32.mrf.mxu0
      %v1200 = vadd.f32 0.0, %v1199
      %v1201 = vpop.f32.mrf.mxu0
      %v1202 = vadd.f32 0.0, %v1201
      %1203 = vmatmul.bf16.gmra.mxu0 %v891
      %v1204 = vpop.f32.mrf.mxu0
      %v1205 = vadd.f32 0.0, %v1204
      %v1206 = vpop.f32.mrf.mxu0
      %v1207 = vadd.f32 0.0, %v1206
      %1208 = vmatmul.bf16.gmra.mxu0 %v894
      %v1209 = vpop.f32.mrf.mxu0
      %v1210 = vadd.f32 0.0, %v1209
      %v1211 = vpop.f32.mrf.mxu0
      %v1212 = vadd.f32 0.0, %v1211
      %1213 = vmatmul.bf16.gmra.mxu0 %v897
      %v1214 = vpop.f32.mrf.mxu0
      %v1215 = vadd.f32 0.0, %v1214
      %v1216 = vpop.f32.mrf.mxu0
      %v1217 = vadd.f32 0.0, %v1216
      %1218 = vmatmul.bf16.gmra.mxu0 %v900
      %v1219 = vpop.f32.mrf.mxu0
      %v1220 = vadd.f32 0.0, %v1219
      %v1221 = vpop.f32.mrf.mxu0
      %v1222 = vadd.f32 0.0, %v1221
      %1223 = vmatmul.bf16.gmra.mxu0 %v903
      %v1224 = vpop.f32.mrf.mxu0
      %v1225 = vadd.f32 0.0, %v1224
      %v1226 = vpop.f32.mrf.mxu0
      %v1227 = vadd.f32 0.0, %v1226
      %1228 = vmatmul.bf16.gmra.mxu0 %v906
      %v1229 = vpop.f32.mrf.mxu0
      %v1230 = vadd.f32 0.0, %v1229
      %v1231 = vpop.f32.mrf.mxu0
      %v1232 = vadd.f32 0.0, %v1231
      %1233 = vmatmul.bf16.gmra.mxu0 %v909
      %v1234 = vpop.f32.mrf.mxu0
      %v1235 = vadd.f32 0.0, %v1234
      %v1236 = vpop.f32.mrf.mxu0
      %v1237 = vadd.f32 0.0, %v1236
      %1238 = vmatmul.bf16.gmra.mxu0 %v912
      %v1239 = vpop.f32.mrf.mxu0
      %v1240 = vadd.f32 0.0, %v1239
      %v1241 = vpop.f32.mrf.mxu0
      %v1242 = vadd.f32 0.0, %v1241
      %1243 = vmatmul.bf16.gmra.mxu0 %v915
      %v1244 = vpop.f32.mrf.mxu0
      %v1245 = vadd.f32 0.0, %v1244
      %v1246 = vpop.f32.mrf.mxu0
      %v1247 = vadd.f32 0.0, %v1246
      %1248 = vmatmul.bf16.gmra.mxu0 %v918
      %v1249 = vpop.f32.mrf.mxu0
      %v1250 = vadd.f32 0.0, %v1249
      %v1251 = vpop.f32.mrf.mxu0
      %v1252 = vadd.f32 0.0, %v1251
      %1253 = vmatmul.bf16.gmra.mxu0 %v921
      %v1254 = vpop.f32.mrf.mxu0
      %v1255 = vadd.f32 0.0, %v1254
      %v1256 = vpop.f32.mrf.mxu0
      %v1257 = vadd.f32 0.0, %v1256
      %1258 = vdwg.mxu0
      %v1259 = vld [vmem:[%s253] sm:$0x1]
      %v1261 = vperm.slane %v1259, 0
      %v1263 = vmul.f32 %v940, %v1261
      %v1264 = vmul.f32 %v942, %v1261
      %v1265 = vmul.f32 %v945, %v1261
      %v1266 = vmul.f32 %v947, %v1261
      %v1267 = vmul.f32 %v950, %v1261
      %v1268 = vmul.f32 %v952, %v1261
      %v1269 = vmul.f32 %v955, %v1261
      %v1270 = vmul.f32 %v957, %v1261
      %v1271 = vmul.f32 %v960, %v1261
      %v1272 = vmul.f32 %v962, %v1261
      %v1273 = vmul.f32 %v965, %v1261
      %v1274 = vmul.f32 %v967, %v1261
      %v1275 = vmul.f32 %v970, %v1261
      %v1276 = vmul.f32 %v972, %v1261
      %v1277 = vmul.f32 %v975, %v1261
      %v1278 = vmul.f32 %v977, %v1261
      %v1279 = vmul.f32 %v980, %v1261
      %v1280 = vmul.f32 %v982, %v1261
      %v1281 = vmul.f32 %v985, %v1261
      %v1282 = vmul.f32 %v987, %v1261
      %v1283 = vmul.f32 %v990, %v1261
      %v1284 = vmul.f32 %v992, %v1261
      %v1285 = vmul.f32 %v995, %v1261
      %v1286 = vmul.f32 %v997, %v1261
      %v1287 = vmul.f32 %v1000, %v1261
      %v1288 = vmul.f32 %v1002, %v1261
      %v1289 = vmul.f32 %v1005, %v1261
      %v1290 = vmul.f32 %v1007, %v1261
      %v1291 = vmul.f32 %v1010, %v1261
      %v1292 = vmul.f32 %v1012, %v1261
      %v1293 = vmul.f32 %v1015, %v1261
      %v1294 = vmul.f32 %v1017, %v1261
      %v1295 = vmul.f32 %v1020, %v1261
      %v1296 = vmul.f32 %v1022, %v1261
      %v1297 = vmul.f32 %v1025, %v1261
      %v1298 = vmul.f32 %v1027, %v1261
      %v1299 = vmul.f32 %v1030, %v1261
      %v1300 = vmul.f32 %v1032, %v1261
      %v1301 = vmul.f32 %v1035, %v1261
      %v1302 = vmul.f32 %v1037, %v1261
      %v1303 = vmul.f32 %v1040, %v1261
      %v1304 = vmul.f32 %v1042, %v1261
      %v1305 = vmul.f32 %v1045, %v1261
      %v1306 = vmul.f32 %v1047, %v1261
      %v1307 = vmul.f32 %v1050, %v1261
      %v1308 = vmul.f32 %v1052, %v1261
      %v1309 = vmul.f32 %v1055, %v1261
      %v1310 = vmul.f32 %v1057, %v1261
      %v1311 = vmul.f32 %v1060, %v1261
      %v1312 = vmul.f32 %v1062, %v1261
      %v1313 = vmul.f32 %v1065, %v1261
      %v1314 = vmul.f32 %v1067, %v1261
      %v1315 = vmul.f32 %v1070, %v1261
      %v1316 = vmul.f32 %v1072, %v1261
      %v1317 = vmul.f32 %v1075, %v1261
      %v1318 = vmul.f32 %v1077, %v1261
      %v1319 = vmul.f32 %v1080, %v1261
      %v1320 = vmul.f32 %v1082, %v1261
      %v1321 = vmul.f32 %v1085, %v1261
      %v1322 = vmul.f32 %v1087, %v1261
      %v1323 = vmul.f32 %v1090, %v1261
      %v1324 = vmul.f32 %v1092, %v1261
      %v1325 = vmul.f32 %v1095, %v1261
      %v1326 = vmul.f32 %v1097, %v1261
      %v1327 = vmul.f32 %v1100, %v1261
      %v1328 = vmul.f32 %v1102, %v1261
      %v1329 = vmul.f32 %v1105, %v1261
      %v1330 = vmul.f32 %v1107, %v1261
      %v1331 = vmul.f32 %v1110, %v1261
      %v1332 = vmul.f32 %v1112, %v1261
      %v1333 = vmul.f32 %v1115, %v1261
      %v1334 = vmul.f32 %v1117, %v1261
      %v1335 = vmul.f32 %v1120, %v1261
      %v1336 = vmul.f32 %v1122, %v1261
      %v1337 = vmul.f32 %v1125, %v1261
      %v1338 = vmul.f32 %v1127, %v1261
      %v1339 = vmul.f32 %v1130, %v1261
      %v1340 = vmul.f32 %v1132, %v1261
      %v1341 = vmul.f32 %v1135, %v1261
      %v1342 = vmul.f32 %v1137, %v1261
      %v1343 = vmul.f32 %v1140, %v1261
      %v1344 = vmul.f32 %v1142, %v1261
      %v1345 = vmul.f32 %v1145, %v1261
      %v1346 = vmul.f32 %v1147, %v1261
      %v1347 = vmul.f32 %v1150, %v1261
      %v1348 = vmul.f32 %v1152, %v1261
      %v1349 = vmul.f32 %v1155, %v1261
      %v1350 = vmul.f32 %v1157, %v1261
      %v1351 = vmul.f32 %v1160, %v1261
      %v1352 = vmul.f32 %v1162, %v1261
      %v1353 = vmul.f32 %v1165, %v1261
      %v1354 = vmul.f32 %v1167, %v1261
      %v1355 = vmul.f32 %v1170, %v1261
      %v1356 = vmul.f32 %v1172, %v1261
      %v1357 = vmul.f32 %v1175, %v1261
      %v1358 = vmul.f32 %v1177, %v1261
      %v1359 = vmul.f32 %v1180, %v1261
      %v1360 = vmul.f32 %v1182, %v1261
      %v1361 = vmul.f32 %v1185, %v1261
      %v1362 = vmul.f32 %v1187, %v1261
      %v1363 = vmul.f32 %v1190, %v1261
      %v1364 = vmul.f32 %v1192, %v1261
      %v1365 = vmul.f32 %v1195, %v1261
      %v1366 = vmul.f32 %v1197, %v1261
      %v1367 = vmul.f32 %v1200, %v1261
      %v1368 = vmul.f32 %v1202, %v1261
      %v1369 = vmul.f32 %v1205, %v1261
      %v1370 = vmul.f32 %v1207, %v1261
      %v1371 = vmul.f32 %v1210, %v1261
      %v1372 = vmul.f32 %v1212, %v1261
      %v1373 = vmul.f32 %v1215, %v1261
      %v1374 = vmul.f32 %v1217, %v1261
      %v1375 = vmul.f32 %v1220, %v1261
      %v1376 = vmul.f32 %v1222, %v1261
      %v1377 = vmul.f32 %v1225, %v1261
      %v1378 = vmul.f32 %v1227, %v1261
      %v1379 = vmul.f32 %v1230, %v1261
      %v1380 = vmul.f32 %v1232, %v1261
      %v1381 = vmul.f32 %v1235, %v1261
      %v1382 = vmul.f32 %v1237, %v1261
      %v1383 = vmul.f32 %v1240, %v1261
      %v1384 = vmul.f32 %v1242, %v1261
      %v1385 = vmul.f32 %v1245, %v1261
      %v1386 = vmul.f32 %v1247, %v1261
      %v1387 = vmul.f32 %v1250, %v1261
      %v1388 = vmul.f32 %v1252, %v1261
      %v1389 = vmul.f32 %v1255, %v1261
      %v1390 = vmul.f32 %v1257, %v1261
      %v1391 = vld [vmem:[%s256] sm:$0x1]
      %v1393 = vperm.slane %v1391, 0
      %v1395 = vadd.f32 %v1263, %v1393
      %v1396 = vadd.f32 %v1264, %v1393
      %v1397 = vadd.f32 %v1265, %v1393
      %v1398 = vadd.f32 %v1266, %v1393
      %v1399 = vadd.f32 %v1267, %v1393
      %v1400 = vadd.f32 %v1268, %v1393
      %v1401 = vadd.f32 %v1269, %v1393
      %v1402 = vadd.f32 %v1270, %v1393
      %v1403 = vadd.f32 %v1271, %v1393
      %v1404 = vadd.f32 %v1272, %v1393
      %v1405 = vadd.f32 %v1273, %v1393
      %v1406 = vadd.f32 %v1274, %v1393
      %v1407 = vadd.f32 %v1275, %v1393
      %v1408 = vadd.f32 %v1276, %v1393
      %v1409 = vadd.f32 %v1277, %v1393
      %v1410 = vadd.f32 %v1278, %v1393
      %v1411 = vadd.f32 %v1279, %v1393
      %v1412 = vadd.f32 %v1280, %v1393
      %v1413 = vadd.f32 %v1281, %v1393
      %v1414 = vadd.f32 %v1282, %v1393
      %v1415 = vadd.f32 %v1283, %v1393
      %v1416 = vadd.f32 %v1284, %v1393
      %v1417 = vadd.f32 %v1285, %v1393
      %v1418 = vadd.f32 %v1286, %v1393
      %v1419 = vadd.f32 %v1287, %v1393
      %v1420 = vadd.f32 %v1288, %v1393
      %v1421 = vadd.f32 %v1289, %v1393
      %v1422 = vadd.f32 %v1290, %v1393
      %v1423 = vadd.f32 %v1291, %v1393
      %v1424 = vadd.f32 %v1292, %v1393
      %v1425 = vadd.f32 %v1293, %v1393
      %v1426 = vadd.f32 %v1294, %v1393
      %v1427 = vadd.f32 %v1295, %v1393
      %v1428 = vadd.f32 %v1296, %v1393
      %v1429 = vadd.f32 %v1297, %v1393
      %v1430 = vadd.f32 %v1298, %v1393
      %v1431 = vadd.f32 %v1299, %v1393
      %v1432 = vadd.f32 %v1300, %v1393
      %v1433 = vadd.f32 %v1301, %v1393
      %v1434 = vadd.f32 %v1302, %v1393
      %v1435 = vadd.f32 %v1303, %v1393
      %v1436 = vadd.f32 %v1304, %v1393
      %v1437 = vadd.f32 %v1305, %v1393
      %v1438 = vadd.f32 %v1306, %v1393
      %v1439 = vadd.f32 %v1307, %v1393
      %v1440 = vadd.f32 %v1308, %v1393
      %v1441 = vadd.f32 %v1309, %v1393
      %v1442 = vadd.f32 %v1310, %v1393
      %v1443 = vadd.f32 %v1311, %v1393
      %v1444 = vadd.f32 %v1312, %v1393
      %v1445 = vadd.f32 %v1313, %v1393
      %v1446 = vadd.f32 %v1314, %v1393
      %v1447 = vadd.f32 %v1315, %v1393
      %v1448 = vadd.f32 %v1316, %v1393
      %v1449 = vadd.f32 %v1317, %v1393
      %v1450 = vadd.f32 %v1318, %v1393
      %v1451 = vadd.f32 %v1319, %v1393
      %v1452 = vadd.f32 %v1320, %v1393
      %v1453 = vadd.f32 %v1321, %v1393
      %v1454 = vadd.f32 %v1322, %v1393
      %v1455 = vadd.f32 %v1323, %v1393
      %v1456 = vadd.f32 %v1324, %v1393
      %v1457 = vadd.f32 %v1325, %v1393
      %v1458 = vadd.f32 %v1326, %v1393
      %v1459 = vadd.f32 %v1327, %v1393
      %v1460 = vadd.f32 %v1328, %v1393
      %v1461 = vadd.f32 %v1329, %v1393
      %v1462 = vadd.f32 %v1330, %v1393
      %v1463 = vadd.f32 %v1331, %v1393
      %v1464 = vadd.f32 %v1332, %v1393
      %v1465 = vadd.f32 %v1333, %v1393
      %v1466 = vadd.f32 %v1334, %v1393
      %v1467 = vadd.f32 %v1335, %v1393
      %v1468 = vadd.f32 %v1336, %v1393
      %v1469 = vadd.f32 %v1337, %v1393
      %v1470 = vadd.f32 %v1338, %v1393
      %v1471 = vadd.f32 %v1339, %v1393
      %v1472 = vadd.f32 %v1340, %v1393
      %v1473 = vadd.f32 %v1341, %v1393
      %v1474 = vadd.f32 %v1342, %v1393
      %v1475 = vadd.f32 %v1343, %v1393
      %v1476 = vadd.f32 %v1344, %v1393
      %v1477 = vadd.f32 %v1345, %v1393
      %v1478 = vadd.f32 %v1346, %v1393
      %v1479 = vadd.f32 %v1347, %v1393
      %v1480 = vadd.f32 %v1348, %v1393
      %v1481 = vadd.f32 %v1349, %v1393
      %v1482 = vadd.f32 %v1350, %v1393
      %v1483 = vadd.f32 %v1351, %v1393
      %v1484 = vadd.f32 %v1352, %v1393
      %v1485 = vadd.f32 %v1353, %v1393
      %v1486 = vadd.f32 %v1354, %v1393
      %v1487 = vadd.f32 %v1355, %v1393
      %v1488 = vadd.f32 %v1356, %v1393
      %v1489 = vadd.f32 %v1357, %v1393
      %v1490 = vadd.f32 %v1358, %v1393
      %v1491 = vadd.f32 %v1359, %v1393
      %v1492 = vadd.f32 %v1360, %v1393
      %v1493 = vadd.f32 %v1361, %v1393
      %v1494 = vadd.f32 %v1362, %v1393
      %v1495 = vadd.f32 %v1363, %v1393
      %v1496 = vadd.f32 %v1364, %v1393
      %v1497 = vadd.f32 %v1365, %v1393
      %v1498 = vadd.f32 %v1366, %v1393
      %v1499 = vadd.f32 %v1367, %v1393
      %v1500 = vadd.f32 %v1368, %v1393
      %v1501 = vadd.f32 %v1369, %v1393
      %v1502 = vadd.f32 %v1370, %v1393
      %v1503 = vadd.f32 %v1371, %v1393
      %v1504 = vadd.f32 %v1372, %v1393
      %v1505 = vadd.f32 %v1373, %v1393
      %v1506 = vadd.f32 %v1374, %v1393
      %v1507 = vadd.f32 %v1375, %v1393
      %v1508 = vadd.f32 %v1376, %v1393
      %v1509 = vadd.f32 %v1377, %v1393
      %v1510 = vadd.f32 %v1378, %v1393
      %v1511 = vadd.f32 %v1379, %v1393
      %v1512 = vadd.f32 %v1380, %v1393
      %v1513 = vadd.f32 %v1381, %v1393
      %v1514 = vadd.f32 %v1382, %v1393
      %v1515 = vadd.f32 %v1383, %v1393
      %v1516 = vadd.f32 %v1384, %v1393
      %v1517 = vadd.f32 %v1385, %v1393
      %v1518 = vadd.f32 %v1386, %v1393
      %v1519 = vadd.f32 %v1387, %v1393
      %v1520 = vadd.f32 %v1388, %v1393
      %v1521 = vadd.f32 %v1389, %v1393
      %v1522 = vadd.f32 %v1390, %v1393
      %v1523 = vmul.f32 %v1395, 0.01
      %v1524 = vmul.f32 %v1396, 0.01
      %v1525 = vmul.f32 %v1397, 0.01
      %v1526 = vmul.f32 %v1398, 0.01
      %v1527 = vmul.f32 %v1399, 0.01
      %v1528 = vmul.f32 %v1400, 0.01
      %v1529 = vmul.f32 %v1401, 0.01
      %v1530 = vmul.f32 %v1402, 0.01
      %v1531 = vmul.f32 %v1403, 0.01
      %v1532 = vmul.f32 %v1404, 0.01
      %v1533 = vmul.f32 %v1405, 0.01
      %v1534 = vmul.f32 %v1406, 0.01
      %v1535 = vmul.f32 %v1407, 0.01
      %v1536 = vmul.f32 %v1408, 0.01
      %v1537 = vmul.f32 %v1409, 0.01
      %v1538 = vmul.f32 %v1410, 0.01
      %v1539 = vmul.f32 %v1411, 0.01
      %v1540 = vmul.f32 %v1412, 0.01
      %v1541 = vmul.f32 %v1413, 0.01
      %v1542 = vmul.f32 %v1414, 0.01
      %v1543 = vmul.f32 %v1415, 0.01
      %v1544 = vmul.f32 %v1416, 0.01
      %v1545 = vmul.f32 %v1417, 0.01
      %v1546 = vmul.f32 %v1418, 0.01
      %v1547 = vmul.f32 %v1419, 0.01
      %v1548 = vmul.f32 %v1420, 0.01
      %v1549 = vmul.f32 %v1421, 0.01
      %v1550 = vmul.f32 %v1422, 0.01
      %v1551 = vmul.f32 %v1423, 0.01
      %v1552 = vmul.f32 %v1424, 0.01
      %v1553 = vmul.f32 %v1425, 0.01
      %v1554 = vmul.f32 %v1426, 0.01
      %v1555 = vmul.f32 %v1427, 0.01
      %v1556 = vmul.f32 %v1428, 0.01
      %v1557 = vmul.f32 %v1429, 0.01
      %v1558 = vmul.f32 %v1430, 0.01
      %v1559 = vmul.f32 %v1431, 0.01
      %v1560 = vmul.f32 %v1432, 0.01
      %v1561 = vmul.f32 %v1433, 0.01
      %v1562 = vmul.f32 %v1434, 0.01
      %v1563 = vmul.f32 %v1435, 0.01
      %v1564 = vmul.f32 %v1436, 0.01
      %v1565 = vmul.f32 %v1437, 0.01
      %v1566 = vmul.f32 %v1438, 0.01
      %v1567 = vmul.f32 %v1439, 0.01
      %v1568 = vmul.f32 %v1440, 0.01
      %v1569 = vmul.f32 %v1441, 0.01
      %v1570 = vmul.f32 %v1442, 0.01
      %v1571 = vmul.f32 %v1443, 0.01
      %v1572 = vmul.f32 %v1444, 0.01
      %v1573 = vmul.f32 %v1445, 0.01
      %v1574 = vmul.f32 %v1446, 0.01
      %v1575 = vmul.f32 %v1447, 0.01
      %v1576 = vmul.f32 %v1448, 0.01
      %v1577 = vmul.f32 %v1449, 0.01
      %v1578 = vmul.f32 %v1450, 0.01
      %v1579 = vmul.f32 %v1451, 0.01
      %v1580 = vmul.f32 %v1452, 0.01
      %v1581 = vmul.f32 %v1453, 0.01
      %v1582 = vmul.f32 %v1454, 0.01
      %v1583 = vmul.f32 %v1455, 0.01
      %v1584 = vmul.f32 %v1456, 0.01
      %v1585 = vmul.f32 %v1457, 0.01
      %v1586 = vmul.f32 %v1458, 0.01
      %v1587 = vmul.f32 %v1459, 0.01
      %v1588 = vmul.f32 %v1460, 0.01
      %v1589 = vmul.f32 %v1461, 0.01
      %v1590 = vmul.f32 %v1462, 0.01
      %v1591 = vmul.f32 %v1463, 0.01
      %v1592 = vmul.f32 %v1464, 0.01
      %v1593 = vmul.f32 %v1465, 0.01
      %v1594 = vmul.f32 %v1466, 0.01
      %v1595 = vmul.f32 %v1467, 0.01
      %v1596 = vmul.f32 %v1468, 0.01
      %v1597 = vmul.f32 %v1469, 0.01
      %v1598 = vmul.f32 %v1470, 0.01
      %v1599 = vmul.f32 %v1471, 0.01
      %v1600 = vmul.f32 %v1472, 0.01
      %v1601 = vmul.f32 %v1473, 0.01
      %v1602 = vmul.f32 %v1474, 0.01
      %v1603 = vmul.f32 %v1475, 0.01
      %v1604 = vmul.f32 %v1476, 0.01
      %v1605 = vmul.f32 %v1477, 0.01
      %v1606 = vmul.f32 %v1478, 0.01
      %v1607 = vmul.f32 %v1479, 0.01
      %v1608 = vmul.f32 %v1480, 0.01
      %v1609 = vmul.f32 %v1481, 0.01
      %v1610 = vmul.f32 %v1482, 0.01
      %v1611 = vmul.f32 %v1483, 0.01
      %v1612 = vmul.f32 %v1484, 0.01
      %v1613 = vmul.f32 %v1485, 0.01
      %v1614 = vmul.f32 %v1486, 0.01
      %v1615 = vmul.f32 %v1487, 0.01
      %v1616 = vmul.f32 %v1488, 0.01
      %v1617 = vmul.f32 %v1489, 0.01
      %v1618 = vmul.f32 %v1490, 0.01
      %v1619 = vmul.f32 %v1491, 0.01
      %v1620 = vmul.f32 %v1492, 0.01
      %v1621 = vmul.f32 %v1493, 0.01
      %v1622 = vmul.f32 %v1494, 0.01
      %v1623 = vmul.f32 %v1495, 0.01
      %v1624 = vmul.f32 %v1496, 0.01
      %v1625 = vmul.f32 %v1497, 0.01
      %v1626 = vmul.f32 %v1498, 0.01
      %v1627 = vmul.f32 %v1499, 0.01
      %v1628 = vmul.f32 %v1500, 0.01
      %v1629 = vmul.f32 %v1501, 0.01
      %v1630 = vmul.f32 %v1502, 0.01
      %v1631 = vmul.f32 %v1503, 0.01
      %v1632 = vmul.f32 %v1504, 0.01
      %v1633 = vmul.f32 %v1505, 0.01
      %v1634 = vmul.f32 %v1506, 0.01
      %v1635 = vmul.f32 %v1507, 0.01
      %v1636 = vmul.f32 %v1508, 0.01
      %v1637 = vmul.f32 %v1509, 0.01
      %v1638 = vmul.f32 %v1510, 0.01
      %v1639 = vmul.f32 %v1511, 0.01
      %v1640 = vmul.f32 %v1512, 0.01
      %v1641 = vmul.f32 %v1513, 0.01
      %v1642 = vmul.f32 %v1514, 0.01
      %v1643 = vmul.f32 %v1515, 0.01
      %v1644 = vmul.f32 %v1516, 0.01
      %v1645 = vmul.f32 %v1517, 0.01
      %v1646 = vmul.f32 %v1518, 0.01
      %v1647 = vmul.f32 %v1519, 0.01
      %v1648 = vmul.f32 %v1520, 0.01
      %v1649 = vmul.f32 %v1521, 0.01
      %v1650 = vmul.f32 %v1522, 0.01
      %v1651 = vmax.f32 %v1395, %v1523
      %v1652 = vmax.f32 %v1396, %v1524
      %v1653 = vmax.f32 %v1397, %v1525
      %v1654 = vmax.f32 %v1398, %v1526
      %v1655 = vmax.f32 %v1399, %v1527
      %v1656 = vmax.f32 %v1400, %v1528
      %v1657 = vmax.f32 %v1401, %v1529
      %v1658 = vmax.f32 %v1402, %v1530
      %v1659 = vmax.f32 %v1403, %v1531
      %v1660 = vmax.f32 %v1404, %v1532
      %v1661 = vmax.f32 %v1405, %v1533
      %v1662 = vmax.f32 %v1406, %v1534
      %v1663 = vmax.f32 %v1407, %v1535
      %v1664 = vmax.f32 %v1408, %v1536
      %v1665 = vmax.f32 %v1409, %v1537
      %v1666 = vmax.f32 %v1410, %v1538
      %v1667 = vmax.f32 %v1411, %v1539
      %v1668 = vmax.f32 %v1412, %v1540
      %v1669 = vmax.f32 %v1413, %v1541
      %v1670 = vmax.f32 %v1414, %v1542
      %v1671 = vmax.f32 %v1415, %v1543
      %v1672 = vmax.f32 %v1416, %v1544
      %v1673 = vmax.f32 %v1417, %v1545
      %v1674 = vmax.f32 %v1418, %v1546
      %v1675 = vmax.f32 %v1419, %v1547
      %v1676 = vmax.f32 %v1420, %v1548
      %v1677 = vmax.f32 %v1421, %v1549
      %v1678 = vmax.f32 %v1422, %v1550
      %v1679 = vmax.f32 %v1423, %v1551
      %v1680 = vmax.f32 %v1424, %v1552
      %v1681 = vmax.f32 %v1425, %v1553
      %v1682 = vmax.f32 %v1426, %v1554
      %v1683 = vmax.f32 %v1427, %v1555
      %v1684 = vmax.f32 %v1428, %v1556
      %v1685 = vmax.f32 %v1429, %v1557
      %v1686 = vmax.f32 %v1430, %v1558
      %v1687 = vmax.f32 %v1431, %v1559
      %v1688 = vmax.f32 %v1432, %v1560
      %v1689 = vmax.f32 %v1433, %v1561
      %v1690 = vmax.f32 %v1434, %v1562
      %v1691 = vmax.f32 %v1435, %v1563
      %v1692 = vmax.f32 %v1436, %v1564
      %v1693 = vmax.f32 %v1437, %v1565
      %v1694 = vmax.f32 %v1438, %v1566
      %v1695 = vmax.f32 %v1439, %v1567
      %v1696 = vmax.f32 %v1440, %v1568
      %v1697 = vmax.f32 %v1441, %v1569
      %v1698 = vmax.f32 %v1442, %v1570
      %v1699 = vmax.f32 %v1443, %v1571
      %v1700 = vmax.f32 %v1444, %v1572
      %v1701 = vmax.f32 %v1445, %v1573
      %v1702 = vmax.f32 %v1446, %v1574
      %v1703 = vmax.f32 %v1447, %v1575
      %v1704 = vmax.f32 %v1448, %v1576
      %v1705 = vmax.f32 %v1449, %v1577
      %v1706 = vmax.f32 %v1450, %v1578
      %v1707 = vmax.f32 %v1451, %v1579
      %v1708 = vmax.f32 %v1452, %v1580
      %v1709 = vmax.f32 %v1453, %v1581
      %v1710 = vmax.f32 %v1454, %v1582
      %v1711 = vmax.f32 %v1455, %v1583
      %v1712 = vmax.f32 %v1456, %v1584
      %v1713 = vmax.f32 %v1457, %v1585
      %v1714 = vmax.f32 %v1458, %v1586
      %v1715 = vmax.f32 %v1459, %v1587
      %v1716 = vmax.f32 %v1460, %v1588
      %v1717 = vmax.f32 %v1461, %v1589
      %v1718 = vmax.f32 %v1462, %v1590
      %v1719 = vmax.f32 %v1463, %v1591
      %v1720 = vmax.f32 %v1464, %v1592
      %v1721 = vmax.f32 %v1465, %v1593
      %v1722 = vmax.f32 %v1466, %v1594
      %v1723 = vmax.f32 %v1467, %v1595
      %v1724 = vmax.f32 %v1468, %v1596
      %v1725 = vmax.f32 %v1469, %v1597
      %v1726 = vmax.f32 %v1470, %v1598
      %v1727 = vmax.f32 %v1471, %v1599
      %v1728 = vmax.f32 %v1472, %v1600
      %v1729 = vmax.f32 %v1473, %v1601
      %v1730 = vmax.f32 %v1474, %v1602
      %v1731 = vmax.f32 %v1475, %v1603
      %v1732 = vmax.f32 %v1476, %v1604
      %v1733 = vmax.f32 %v1477, %v1605
      %v1734 = vmax.f32 %v1478, %v1606
      %v1735 = vmax.f32 %v1479, %v1607
      %v1736 = vmax.f32 %v1480, %v1608
      %v1737 = vmax.f32 %v1481, %v1609
      %v1738 = vmax.f32 %v1482, %v1610
      %v1739 = vmax.f32 %v1483, %v1611
      %v1740 = vmax.f32 %v1484, %v1612
      %v1741 = vmax.f32 %v1485, %v1613
      %v1742 = vmax.f32 %v1486, %v1614
      %v1743 = vmax.f32 %v1487, %v1615
      %v1744 = vmax.f32 %v1488, %v1616
      %v1745 = vmax.f32 %v1489, %v1617
      %v1746 = vmax.f32 %v1490, %v1618
      %v1747 = vmax.f32 %v1491, %v1619
      %v1748 = vmax.f32 %v1492, %v1620
      %v1749 = vmax.f32 %v1493, %v1621
      %v1750 = vmax.f32 %v1494, %v1622
      %v1751 = vmax.f32 %v1495, %v1623
      %v1752 = vmax.f32 %v1496, %v1624
      %v1753 = vmax.f32 %v1497, %v1625
      %v1754 = vmax.f32 %v1498, %v1626
      %v1755 = vmax.f32 %v1499, %v1627
      %v1756 = vmax.f32 %v1500, %v1628
      %v1757 = vmax.f32 %v1501, %v1629
      %v1758 = vmax.f32 %v1502, %v1630
      %v1759 = vmax.f32 %v1503, %v1631
      %v1760 = vmax.f32 %v1504, %v1632
      %v1761 = vmax.f32 %v1505, %v1633
      %v1762 = vmax.f32 %v1506, %v1634
      %v1763 = vmax.f32 %v1507, %v1635
      %v1764 = vmax.f32 %v1508, %v1636
      %v1765 = vmax.f32 %v1509, %v1637
      %v1766 = vmax.f32 %v1510, %v1638
      %v1767 = vmax.f32 %v1511, %v1639
      %v1768 = vmax.f32 %v1512, %v1640
      %v1769 = vmax.f32 %v1513, %v1641
      %v1770 = vmax.f32 %v1514, %v1642
      %v1771 = vmax.f32 %v1515, %v1643
      %v1772 = vmax.f32 %v1516, %v1644
      %v1773 = vmax.f32 %v1517, %v1645
      %v1774 = vmax.f32 %v1518, %v1646
      %v1775 = vmax.f32 %v1519, %v1647
      %v1776 = vmax.f32 %v1520, %v1648
      %v1777 = vmax.f32 %v1521, %v1649
      %v1778 = vmax.f32 %v1522, %v1650
      %v1779 = vpack.c.bf16 %v1651, %v1651
      %v1780 = vpack.c.bf16 %v1652, %v1652
      %v1781 = vpack.c.bf16 %v1653, %v1653
      %v1782 = vpack.c.bf16 %v1654, %v1654
      %v1783 = vpack.c.bf16 %v1655, %v1655
      %v1784 = vpack.c.bf16 %v1656, %v1656
      %v1785 = vpack.c.bf16 %v1657, %v1657
      %v1786 = vpack.c.bf16 %v1658, %v1658
      %v1787 = vpack.c.bf16 %v1659, %v1659
      %v1788 = vpack.c.bf16 %v1660, %v1660
      %v1789 = vpack.c.bf16 %v1661, %v1661
      %v1790 = vpack.c.bf16 %v1662, %v1662
      %v1791 = vpack.c.bf16 %v1663, %v1663
      %v1792 = vpack.c.bf16 %v1664, %v1664
      %v1793 = vpack.c.bf16 %v1665, %v1665
      %v1794 = vpack.c.bf16 %v1666, %v1666
      %v1795 = vpack.c.bf16 %v1667, %v1667
      %v1796 = vpack.c.bf16 %v1668, %v1668
      %v1797 = vpack.c.bf16 %v1669, %v1669
      %v1798 = vpack.c.bf16 %v1670, %v1670
      %v1799 = vpack.c.bf16 %v1671, %v1671
      %v1800 = vpack.c.bf16 %v1672, %v1672
      %v1801 = vpack.c.bf16 %v1673, %v1673
      %v1802 = vpack.c.bf16 %v1674, %v1674
      %v1803 = vpack.c.bf16 %v1675, %v1675
      %v1804 = vpack.c.bf16 %v1676, %v1676
      %v1805 = vpack.c.bf16 %v1677, %v1677
      %v1806 = vpack.c.bf16 %v1678, %v1678
      %v1807 = vpack.c.bf16 %v1679, %v1679
      %v1808 = vpack.c.bf16 %v1680, %v1680
      %v1809 = vpack.c.bf16 %v1681, %v1681
      %v1810 = vpack.c.bf16 %v1682, %v1682
      %v1811 = vpack.c.bf16 %v1683, %v1683
      %v1812 = vpack.c.bf16 %v1684, %v1684
      %v1813 = vpack.c.bf16 %v1685, %v1685
      %v1814 = vpack.c.bf16 %v1686, %v1686
      %v1815 = vpack.c.bf16 %v1687, %v1687
      %v1816 = vpack.c.bf16 %v1688, %v1688
      %v1817 = vpack.c.bf16 %v1689, %v1689
      %v1818 = vpack.c.bf16 %v1690, %v1690
      %v1819 = vpack.c.bf16 %v1691, %v1691
      %v1820 = vpack.c.bf16 %v1692, %v1692
      %v1821 = vpack.c.bf16 %v1693, %v1693
      %v1822 = vpack.c.bf16 %v1694, %v1694
      %v1823 = vpack.c.bf16 %v1695, %v1695
      %v1824 = vpack.c.bf16 %v1696, %v1696
      %v1825 = vpack.c.bf16 %v1697, %v1697
      %v1826 = vpack.c.bf16 %v1698, %v1698
      %v1827 = vpack.c.bf16 %v1699, %v1699
      %v1828 = vpack.c.bf16 %v1700, %v1700
      %v1829 = vpack.c.bf16 %v1701, %v1701
      %v1830 = vpack.c.bf16 %v1702, %v1702
      %v1831 = vpack.c.bf16 %v1703, %v1703
      %v1832 = vpack.c.bf16 %v1704, %v1704
      %v1833 = vpack.c.bf16 %v1705, %v1705
      %v1834 = vpack.c.bf16 %v1706, %v1706
      %v1835 = vpack.c.bf16 %v1707, %v1707
      %v1836 = vpack.c.bf16 %v1708, %v1708
      %v1837 = vpack.c.bf16 %v1709, %v1709
      %v1838 = vpack.c.bf16 %v1710, %v1710
      %v1839 = vpack.c.bf16 %v1711, %v1711
      %v1840 = vpack.c.bf16 %v1712, %v1712
      %v1841 = vpack.c.bf16 %v1713, %v1713
      %v1842 = vpack.c.bf16 %v1714, %v1714
      %v1843 = vpack.c.bf16 %v1715, %v1715
      %v1844 = vpack.c.bf16 %v1716, %v1716
      %v1845 = vpack.c.bf16 %v1717, %v1717
      %v1846 = vpack.c.bf16 %v1718, %v1718
      %v1847 = vpack.c.bf16 %v1719, %v1719
      %v1848 = vpack.c.bf16 %v1720, %v1720
      %v1849 = vpack.c.bf16 %v1721, %v1721
      %v1850 = vpack.c.bf16 %v1722, %v1722
      %v1851 = vpack.c.bf16 %v1723, %v1723
      %v1852 = vpack.c.bf16 %v1724, %v1724
      %v1853 = vpack.c.bf16 %v1725, %v1725
      %v1854 = vpack.c.bf16 %v1726, %v1726
      %v1855 = vpack.c.bf16 %v1727, %v1727
      %v1856 = vpack.c.bf16 %v1728, %v1728
      %v1857 = vpack.c.bf16 %v1729, %v1729
      %v1858 = vpack.c.bf16 %v1730, %v1730
      %v1859 = vpack.c.bf16 %v1731, %v1731
      %v1860 = vpack.c.bf16 %v1732, %v1732
      %v1861 = vpack.c.bf16 %v1733, %v1733
      %v1862 = vpack.c.bf16 %v1734, %v1734
      %v1863 = vpack.c.bf16 %v1735, %v1735
      %v1864 = vpack.c.bf16 %v1736, %v1736
      %v1865 = vpack.c.bf16 %v1737, %v1737
      %v1866 = vpack.c.bf16 %v1738, %v1738
      %v1867 = vpack.c.bf16 %v1739, %v1739
      %v1868 = vpack.c.bf16 %v1740, %v1740
      %v1869 = vpack.c.bf16 %v1741, %v1741
      %v1870 = vpack.c.bf16 %v1742, %v1742
      %v1871 = vpack.c.bf16 %v1743, %v1743
      %v1872 = vpack.c.bf16 %v1744, %v1744
      %v1873 = vpack.c.bf16 %v1745, %v1745
      %v1874 = vpack.c.bf16 %v1746, %v1746
      %v1875 = vpack.c.bf16 %v1747, %v1747
      %v1876 = vpack.c.bf16 %v1748, %v1748
      %v1877 = vpack.c.bf16 %v1749, %v1749
      %v1878 = vpack.c.bf16 %v1750, %v1750
      %v1879 = vpack.c.bf16 %v1751, %v1751
      %v1880 = vpack.c.bf16 %v1752, %v1752
      %v1881 = vpack.c.bf16 %v1753, %v1753
      %v1882 = vpack.c.bf16 %v1754, %v1754
      %v1883 = vpack.c.bf16 %v1755, %v1755
      %v1884 = vpack.c.bf16 %v1756, %v1756
      %v1885 = vpack.c.bf16 %v1757, %v1757
      %v1886 = vpack.c.bf16 %v1758, %v1758
      %v1887 = vpack.c.bf16 %v1759, %v1759
      %v1888 = vpack.c.bf16 %v1760, %v1760
      %v1889 = vpack.c.bf16 %v1761, %v1761
      %v1890 = vpack.c.bf16 %v1762, %v1762
      %v1891 = vpack.c.bf16 %v1763, %v1763
      %v1892 = vpack.c.bf16 %v1764, %v1764
      %v1893 = vpack.c.bf16 %v1765, %v1765
      %v1894 = vpack.c.bf16 %v1766, %v1766
      %v1895 = vpack.c.bf16 %v1767, %v1767
      %v1896 = vpack.c.bf16 %v1768, %v1768
      %v1897 = vpack.c.bf16 %v1769, %v1769
      %v1898 = vpack.c.bf16 %v1770, %v1770
      %v1899 = vpack.c.bf16 %v1771, %v1771
      %v1900 = vpack.c.bf16 %v1772, %v1772
      %v1901 = vpack.c.bf16 %v1773, %v1773
      %v1902 = vpack.c.bf16 %v1774, %v1774
      %v1903 = vpack.c.bf16 %v1775, %v1775
      %v1904 = vpack.c.bf16 %v1776, %v1776
      %v1905 = vpack.c.bf16 %v1777, %v1777
      %v1906 = vpack.c.bf16 %v1778, %v1778
      %vm1907 = vcmask 519168
      %1908 = vst.msk [vmem:[%s264] sm:$0xf] %vm1907, %v1779
      %1909 = vst.msk [vmem:[%s264 + $0x4] sm:$0xf] %vm1907, %v1780
      %1910 = vst.msk [vmem:[%s264 + $0x8] sm:$0xf] %vm1907, %v1781
      %1911 = vst.msk [vmem:[%s264 + $0xc] sm:$0xf] %vm1907, %v1782
      %1912 = vst.msk [vmem:[%s264 + $0x10] sm:$0xf] %vm1907, %v1783
      %1913 = vst.msk [vmem:[%s264 + $0x14] sm:$0xf] %vm1907, %v1784
      %1914 = vst.msk [vmem:[%s264 + $0x18] sm:$0xf] %vm1907, %v1785
      %1915 = vst.msk [vmem:[%s264 + $0x1c] sm:$0xf] %vm1907, %v1786
      %1916 = vst.msk [vmem:[%s264 + $0x20] sm:$0xf] %vm1907, %v1787
      %1917 = vst.msk [vmem:[%s264 + $0x24] sm:$0xf] %vm1907, %v1788
      %1918 = vst.msk [vmem:[%s264 + $0x28] sm:$0xf] %vm1907, %v1789
      %1919 = vst.msk [vmem:[%s264 + $0x2c] sm:$0xf] %vm1907, %v1790
      %1920 = vst.msk [vmem:[%s264 + $0x30] sm:$0xf] %vm1907, %v1791
      %1921 = vst.msk [vmem:[%s264 + $0x34] sm:$0xf] %vm1907, %v1792
      %1922 = vst.msk [vmem:[%s264 + $0x38] sm:$0xf] %vm1907, %v1793
      %1923 = vst.msk [vmem:[%s264 + $0x3c] sm:$0xf] %vm1907, %v1794
      %1924 = vst.msk [vmem:[%s264 + $0x40] sm:$0xf] %vm1907, %v1795
      %1925 = vst.msk [vmem:[%s264 + $0x44] sm:$0xf] %vm1907, %v1796
      %1926 = vst.msk [vmem:[%s264 + $0x48] sm:$0xf] %vm1907, %v1797
      %1927 = vst.msk [vmem:[%s264 + $0x4c] sm:$0xf] %vm1907, %v1798
      %1928 = vst.msk [vmem:[%s264 + $0x50] sm:$0xf] %vm1907, %v1799
      %1929 = vst.msk [vmem:[%s264 + $0x54] sm:$0xf] %vm1907, %v1800
      %1930 = vst.msk [vmem:[%s264 + $0x58] sm:$0xf] %vm1907, %v1801
      %1931 = vst.msk [vmem:[%s264 + $0x5c] sm:$0xf] %vm1907, %v1802
      %1932 = vst.msk [vmem:[%s264 + $0x60] sm:$0xf] %vm1907, %v1803
      %1933 = vst.msk [vmem:[%s264 + $0x64] sm:$0xf] %vm1907, %v1804
      %1934 = vst.msk [vmem:[%s264 + $0x68] sm:$0xf] %vm1907, %v1805
      %1935 = vst.msk [vmem:[%s264 + $0x6c] sm:$0xf] %vm1907, %v1806
      %1936 = vst.msk [vmem:[%s264 + $0x70] sm:$0xf] %vm1907, %v1807
      %1937 = vst.msk [vmem:[%s264 + $0x74] sm:$0xf] %vm1907, %v1808
      %1938 = vst.msk [vmem:[%s264 + $0x78] sm:$0xf] %vm1907, %v1809
      %1939 = vst.msk [vmem:[%s264 + $0x7c] sm:$0xf] %vm1907, %v1810
      %1940 = vst.msk [vmem:[%s264 + $0x80] sm:$0xf] %vm1907, %v1811
      %1941 = vst.msk [vmem:[%s264 + $0x84] sm:$0xf] %vm1907, %v1812
      %1942 = vst.msk [vmem:[%s264 + $0x88] sm:$0xf] %vm1907, %v1813
      %1943 = vst.msk [vmem:[%s264 + $0x8c] sm:$0xf] %vm1907, %v1814
      %1944 = vst.msk [vmem:[%s264 + $0x90] sm:$0xf] %vm1907, %v1815
      %1945 = vst.msk [vmem:[%s264 + $0x94] sm:$0xf] %vm1907, %v1816
      %1946 = vst.msk [vmem:[%s264 + $0x98] sm:$0xf] %vm1907, %v1817
      %1947 = vst.msk [vmem:[%s264 + $0x9c] sm:$0xf] %vm1907, %v1818
      %1948 = vst.msk [vmem:[%s264 + $0xa0] sm:$0xf] %vm1907, %v1819
      %1949 = vst.msk [vmem:[%s264 + $0xa4] sm:$0xf] %vm1907, %v1820
      %1950 = vst.msk [vmem:[%s264 + $0xa8] sm:$0xf] %vm1907, %v1821
      %1951 = vst.msk [vmem:[%s264 + $0xac] sm:$0xf] %vm1907, %v1822
      %1952 = vst.msk [vmem:[%s264 + $0xb0] sm:$0xf] %vm1907, %v1823
      %1953 = vst.msk [vmem:[%s264 + $0xb4] sm:$0xf] %vm1907, %v1824
      %1954 = vst.msk [vmem:[%s264 + $0xb8] sm:$0xf] %vm1907, %v1825
      %1955 = vst.msk [vmem:[%s264 + $0xbc] sm:$0xf] %vm1907, %v1826
      %1956 = vst.msk [vmem:[%s264 + $0xc0] sm:$0xf] %vm1907, %v1827
      %1957 = vst.msk [vmem:[%s264 + $0xc4] sm:$0xf] %vm1907, %v1828
      %1958 = vst.msk [vmem:[%s264 + $0xc8] sm:$0xf] %vm1907, %v1829
      %1959 = vst.msk [vmem:[%s264 + $0xcc] sm:$0xf] %vm1907, %v1830
      %1960 = vst.msk [vmem:[%s264 + $0xd0] sm:$0xf] %vm1907, %v1831
      %1961 = vst.msk [vmem:[%s264 + $0xd4] sm:$0xf] %vm1907, %v1832
      %1962 = vst.msk [vmem:[%s264 + $0xd8] sm:$0xf] %vm1907, %v1833
      %1963 = vst.msk [vmem:[%s264 + $0xdc] sm:$0xf] %vm1907, %v1834
      %1964 = vst.msk [vmem:[%s264 + $0xe0] sm:$0xf] %vm1907, %v1835
      %1965 = vst.msk [vmem:[%s264 + $0xe4] sm:$0xf] %vm1907, %v1836
      %1966 = vst.msk [vmem:[%s264 + $0xe8] sm:$0xf] %vm1907, %v1837
      %1967 = vst.msk [vmem:[%s264 + $0xec] sm:$0xf] %vm1907, %v1838
      %1968 = vst.msk [vmem:[%s264 + $0xf0] sm:$0xf] %vm1907, %v1839
      %1969 = vst.msk [vmem:[%s264 + $0xf4] sm:$0xf] %vm1907, %v1840
      %1970 = vst.msk [vmem:[%s264 + $0xf8] sm:$0xf] %vm1907, %v1841
      %1971 = vst.msk [vmem:[%s264 + $0xfc] sm:$0xf] %vm1907, %v1842
      %1972 = vst.msk [vmem:[%s264 + $0x100] sm:$0xf] %vm1907, %v1843
      %1973 = vst.msk [vmem:[%s264 + $0x104] sm:$0xf] %vm1907, %v1844
      %1974 = vst.msk [vmem:[%s264 + $0x108] sm:$0xf] %vm1907, %v1845
      %1975 = vst.msk [vmem:[%s264 + $0x10c] sm:$0xf] %vm1907, %v1846
      %1976 = vst.msk [vmem:[%s264 + $0x110] sm:$0xf] %vm1907, %v1847
      %1977 = vst.msk [vmem:[%s264 + $0x114] sm:$0xf] %vm1907, %v1848
      %1978 = vst.msk [vmem:[%s264 + $0x118] sm:$0xf] %vm1907, %v1849
      %1979 = vst.msk [vmem:[%s264 + $0x11c] sm:$0xf] %vm1907, %v1850
      %1980 = vst.msk [vmem:[%s264 + $0x120] sm:$0xf] %vm1907, %v1851
      %1981 = vst.msk [vmem:[%s264 + $0x124] sm:$0xf] %vm1907, %v1852
      %1982 = vst.msk [vmem:[%s264 + $0x128] sm:$0xf] %vm1907, %v1853
      %1983 = vst.msk [vmem:[%s264 + $0x12c] sm:$0xf] %vm1907, %v1854
      %1984 = vst.msk [vmem:[%s264 + $0x130] sm:$0xf] %vm1907, %v1855
      %1985 = vst.msk [vmem:[%s264 + $0x134] sm:$0xf] %vm1907, %v1856
      %1986 = vst.msk [vmem:[%s264 + $0x138] sm:$0xf] %vm1907, %v1857
      %1987 = vst.msk [vmem:[%s264 + $0x13c] sm:$0xf] %vm1907, %v1858
      %1988 = vst.msk [vmem:[%s264 + $0x140] sm:$0xf] %vm1907, %v1859
      %1989 = vst.msk [vmem:[%s264 + $0x144] sm:$0xf] %vm1907, %v1860
      %1990 = vst.msk [vmem:[%s264 + $0x148] sm:$0xf] %vm1907, %v1861
      %1991 = vst.msk [vmem:[%s264 + $0x14c] sm:$0xf] %vm1907, %v1862
      %1992 = vst.msk [vmem:[%s264 + $0x150] sm:$0xf] %vm1907, %v1863
      %1993 = vst.msk [vmem:[%s264 + $0x154] sm:$0xf] %vm1907, %v1864
      %1994 = vst.msk [vmem:[%s264 + $0x158] sm:$0xf] %vm1907, %v1865
      %1995 = vst.msk [vmem:[%s264 + $0x15c] sm:$0xf] %vm1907, %v1866
      %1996 = vst.msk [vmem:[%s264 + $0x160] sm:$0xf] %vm1907, %v1867
      %1997 = vst.msk [vmem:[%s264 + $0x164] sm:$0xf] %vm1907, %v1868
      %1998 = vst.msk [vmem:[%s264 + $0x168] sm:$0xf] %vm1907, %v1869
      %1999 = vst.msk [vmem:[%s264 + $0x16c] sm:$0xf] %vm1907, %v1870
      %2000 = vst.msk [vmem:[%s264 + $0x170] sm:$0xf] %vm1907, %v1871
      %2001 = vst.msk [vmem:[%s264 + $0x174] sm:$0xf] %vm1907, %v1872
      %2002 = vst.msk [vmem:[%s264 + $0x178] sm:$0xf] %vm1907, %v1873
      %2003 = vst.msk [vmem:[%s264 + $0x17c] sm:$0xf] %vm1907, %v1874
      %2004 = vst.msk [vmem:[%s264 + $0x180] sm:$0xf] %vm1907, %v1875
      %2005 = vst.msk [vmem:[%s264 + $0x184] sm:$0xf] %vm1907, %v1876
      %2006 = vst.msk [vmem:[%s264 + $0x188] sm:$0xf] %vm1907, %v1877
      %2007 = vst.msk [vmem:[%s264 + $0x18c] sm:$0xf] %vm1907, %v1878
      %2008 = vst.msk [vmem:[%s264 + $0x190] sm:$0xf] %vm1907, %v1879
      %2009 = vst.msk [vmem:[%s264 + $0x194] sm:$0xf] %vm1907, %v1880
      %2010 = vst.msk [vmem:[%s264 + $0x198] sm:$0xf] %vm1907, %v1881
      %2011 = vst.msk [vmem:[%s264 + $0x19c] sm:$0xf] %vm1907, %v1882
      %2012 = vst.msk [vmem:[%s264 + $0x1a0] sm:$0xf] %vm1907, %v1883
      %2013 = vst.msk [vmem:[%s264 + $0x1a4] sm:$0xf] %vm1907, %v1884
      %2014 = vst.msk [vmem:[%s264 + $0x1a8] sm:$0xf] %vm1907, %v1885
      %2015 = vst.msk [vmem:[%s264 + $0x1ac] sm:$0xf] %vm1907, %v1886
      %2016 = vst.msk [vmem:[%s264 + $0x1b0] sm:$0xf] %vm1907, %v1887
      %2017 = vst.msk [vmem:[%s264 + $0x1b4] sm:$0xf] %vm1907, %v1888
      %2018 = vst.msk [vmem:[%s264 + $0x1b8] sm:$0xf] %vm1907, %v1889
      %2019 = vst.msk [vmem:[%s264 + $0x1bc] sm:$0xf] %vm1907, %v1890
      %2020 = vst.msk [vmem:[%s264 + $0x1c0] sm:$0xf] %vm1907, %v1891
      %2021 = vst.msk [vmem:[%s264 + $0x1c4] sm:$0xf] %vm1907, %v1892
      %2022 = vst.msk [vmem:[%s264 + $0x1c8] sm:$0xf] %vm1907, %v1893
      %2023 = vst.msk [vmem:[%s264 + $0x1cc] sm:$0xf] %vm1907, %v1894
      %2024 = vst.msk [vmem:[%s264 + $0x1d0] sm:$0xf] %vm1907, %v1895
      %2025 = vst.msk [vmem:[%s264 + $0x1d4] sm:$0xf] %vm1907, %v1896
      %2026 = vst.msk [vmem:[%s264 + $0x1d8] sm:$0xf] %vm1907, %v1897
      %2027 = vst.msk [vmem:[%s264 + $0x1dc] sm:$0xf] %vm1907, %v1898
      %2028 = vst.msk [vmem:[%s264 + $0x1e0] sm:$0xf] %vm1907, %v1899
      %2029 = vst.msk [vmem:[%s264 + $0x1e4] sm:$0xf] %vm1907, %v1900
      %2030 = vst.msk [vmem:[%s264 + $0x1e8] sm:$0xf] %vm1907, %v1901
      %2031 = vst.msk [vmem:[%s264 + $0x1ec] sm:$0xf] %vm1907, %v1902
      %2032 = vst.msk [vmem:[%s264 + $0x1f0] sm:$0xf] %vm1907, %v1903
      %2033 = vst.msk [vmem:[%s264 + $0x1f4] sm:$0xf] %vm1907, %v1904
      %2034 = vst.msk [vmem:[%s264 + $0x1f8] sm:$0xf] %vm1907, %v1905
      %2035 = vst.msk [vmem:[%s264 + $0x1fc] sm:$0xf] %vm1907, %v1906
      %s2036 = smul.u32 128, %s19
      %p2037 = scmp.lt.s32.totalorder %s2036, 255
      %s2038 = scalar_select %p2037, %s2036, 255
      %p2039 = scmp.lt.s32.totalorder %s20, 0
      %s2040 = scalar_select %p2039, %s20, 0
      %s2041 = sadd.s32 %s2040, %s2038
      %s2042 = smul.addr %s2041, 4
      %s2043 = scalar_lea.vmem %s4, %s2042
      // Predicated region
      $region37: #{tpu_custom_call.1} parent=35 // pred_check
        %p2044 = pneg %p151
      $region38: #{tpu_custom_call.1} parent=35 // pred_check_branch
        %2046 = sbr.rel (%p2044) target = $region40
      $region39: #{tpu_custom_call.1} parent=35 // pred_region
        %s2047 = smul.u32 128, %s19
      $region40: #{tpu_custom_call.1} parent=35 // pred_fallthru
        _
    $region36: #{tpu_custom_call.1} parent=5 // pred_fallthru
      _
    %p2048 = scmp.le.s32.totalorder 2, %s10
    // Predicated region
    $region41: #{tpu_custom_call.1} parent=5 // pred_check
      %p2049 = pneg %p2048
    $region42: #{tpu_custom_call.1} parent=5 // pred_check_branch
      %2051 = sbr.rel (%p2049) target = $region44
    $region43: #{tpu_custom_call.1} parent=5 // pred_region
      %s2052 = ssub.s32 %s10, 2
      // Predicated region
      $region45: #{tpu_custom_call.1} parent=43 // pred_check
        %p2053 = pneg %p157
      $region46: #{tpu_custom_call.1} parent=43 // pred_check_branch
        %2055 = sbr.rel (%p2053) target = $region48
      $region47: #{tpu_custom_call.1} parent=43 // pred_region
        %s2056 = smul.u32 128, %s21
        %p2057 = scmp.lt.s32.totalorder %s2056, 255
        %s2058 = scalar_select %p2057, %s2056, 255
        %p2059 = scmp.lt.s32.totalorder %s22, 0
        %s2060 = scalar_select %p2059, %s22, 0
        %s2061 = sadd.s32 %s2060, %s2058
        %s2062 = smul.addr %s2061, 4
        %s2063 = scalar_lea.vmem %s4, %s2062
      $region48: #{tpu_custom_call.1} parent=43 // pred_fallthru
        _
    $region44: #{tpu_custom_call.1} parent=5 // pred_fallthru
      _
  $region6: #{tpu_custom_call.1} parent=0 // loop_footer
    %s14 = sadd.s32 1, %s10
  $region7: #{tpu_custom_call.1} parent=0 // loop_footer_branch
    %9 = sbr.rel target = $region3
  $region8: #{tpu_custom_call.1} parent=0 // loop_exit
    _

</llo_original>
